<compile_context>
chip_gen: v7x
topology: tpu7x:2x2x1
jax: 0.10.0
libtpu: 0.0.40
codegen_flags: <defaults>
</compile_context>

<pallas_src>
import jax
import jax.numpy as jnp
from jax import lax
from jax.experimental import pallas as pl
from jax.experimental.pallas import tpu as pltpu

EMBED = 32
HEADS = 4
HEAD_DIM = EMBED // HEADS
FWD_EXP = 4
HIDDEN = FWD_EXP * EMBED
SEQ = 8
BATCH = 2
NS = BATCH * SEQ

# rows of the packed vector slab
(V_DBO, V_DNG, V_DNB, V_TBO, V_TN1G, V_TN1B,
 V_TN2G, V_TN2B, V_FFB2, V_FFB1) = range(10)


# -------------------- Pallas kernel --------------------
def decoder_block_kernel(inp_ref, bias_ref, w_self_ref, w_ckv_ref,
                         w_cqoff1_ref, w_ff2_ref, vecs_ref, out_ref):
    E, H = EMBED, HIDDEN

    inp = inp_ref[...]              # (NS, 3E) = [x | key | value]
    x = inp[:, :E]
    kv_in = inp[:, E:]              # (NS, 2E) = [key | value]
    bias = bias_ref[...]            # (NS, 2*NS) = [trg | src] additive biases
    trg_bias = bias[:, :NS]
    src_bias = bias[:, NS:]

    vecs = vecs_ref[...]            # (10, HIDDEN)

    def vrow(i):                    # (1, E) bias / LN parameter row
        return vecs[i:i + 1, :E]

    ffb1 = vecs[V_FFB1:V_FFB1 + 1, :]   # (1, HIDDEN)

    def softmax_attn(q, k, v, b, wo_t, bo):
        """q/k/v: (NS, E) per-head (block-diag) projected, scale folded into q.
        b: (NS, NS) additive bias (-1e20 masks both the causal/src mask and the
        cross-batch blocks, so one softmax covers both batch elements)."""
        heads = []
        for h in range(HEADS):                              # static, tiny
            cols = slice(h * HEAD_DIM, (h + 1) * HEAD_DIM)
            # energy[q, k] = q_h[q, :] . k_h[k, :]  (contract head_dim)
            e = lax.dot_general(q[:, cols], k[:, cols],
                                (((1,), (1,)), ((), ())),
                                preferred_element_type=jnp.float32) + b
            # max-subtraction kept for overflow safety (inputs not guaranteed
            # bounded); masked (-1e20) entries underflow to exactly 0 in exp.
            e = e - jnp.max(e, axis=-1, keepdims=True)
            p = jnp.exp(e)
            p = p / jnp.sum(p, axis=-1, keepdims=True)      # exact normalization
            heads.append(jnp.dot(p, v[:, cols],
                                 preferred_element_type=jnp.float32))
        o = jnp.concatenate(heads, axis=-1)                 # (NS, E)
        return jnp.dot(o, wo_t, preferred_element_type=jnp.float32) + bo

    def layernorm(z, g, b, eps=1e-5):
        mu = jnp.mean(z, axis=-1, keepdims=True)
        var = jnp.mean((z - mu) ** 2, axis=-1, keepdims=True)
        return (z - mu) * lax.rsqrt(var + eps) * g + b

    # --- DecoderBlock: masked self-attention over x ---
    w_self = w_self_ref[...]        # (E, 4E) = [Wq*s | Wk | Wv | Wo^T]
    qkv = jnp.dot(x, w_self[:, :3 * E],
                  preferred_element_type=jnp.float32)       # one fused push
    a1 = softmax_attn(qkv[:, :E], qkv[:, E:2 * E], qkv[:, 2 * E:3 * E],
                      trg_bias, w_self[:, 3 * E:], vrow(V_DBO))
    # TODO(synk): nn.Dropout is identity here (inference semantics).
    query = layernorm(a1 + x, vrow(V_DNG), vrow(V_DNB))

    # --- TransformerBlock: cross-attention (value, key, query) ---
    w_cqoff1 = w_cqoff1_ref[...]    # (E, H+2E) = [ff_w1^T | t_Wq*s | t_Wo^T]
    q2 = jnp.dot(query, w_cqoff1[:, H:H + E],
                 preferred_element_type=jnp.float32)        # (NS, E)
    kv = jnp.dot(kv_in, w_ckv_ref[...],
                 preferred_element_type=jnp.float32)        # (NS, 2E) = [K | V]
    a2 = softmax_attn(q2, kv[:, :E], kv[:, E:], src_bias,
                      w_cqoff1[:, H + E:], vrow(V_TBO))
    x2 = layernorm(a2 + query, vrow(V_TN1G), vrow(V_TN1B))

    # --- feed-forward ---
    hidden = jnp.maximum(
        jnp.dot(x2, w_cqoff1[:, :H], preferred_element_type=jnp.float32)
        + ffb1, 0.0)
    ff = jnp.dot(hidden, w_ff2_ref[...],
                 preferred_element_type=jnp.float32) + vrow(V_FFB2)
    out = layernorm(ff + x2, vrow(V_TN2G), vrow(V_TN2B))

    out_ref[...] = out.astype(out_ref.dtype)


# -------------------- one-time host-side weight packing --------------------
def pack_params(p):
    scale = 1.0 / (EMBED ** 0.5)

    def bdiag(w):
        # torch Linear weight (hd, hd) applied per head -> block-diag (E, E)
        # so that x_flat @ bdiag(w) == per-head x_h @ w.T
        return jnp.kron(jnp.eye(HEADS, dtype=jnp.float32), w.T)

    z = jnp.zeros((EMBED, EMBED), jnp.float32)
    w_self = jnp.concatenate(
        [bdiag(p['d_wq']) * scale, bdiag(p['d_wk']), bdiag(p['d_wv']),
         p['d_wo'].T], axis=1)                              # (32, 128)
    w_ckv = jnp.concatenate(
        [jnp.concatenate([bdiag(p['t_wk']), z], axis=1),
         jnp.concatenate([z, bdiag(p['t_wv'])], axis=1)], axis=0)   # (64, 64)
    w_cqoff1 = jnp.concatenate(
        [p['ff_w1'].T, bdiag(p['t_wq']) * scale, p['t_wo'].T], axis=1)  # (32,192)
    w_ff2 = p['ff_w2'].T                                    # (128, 32)

    vec_rows = jnp.stack([p['d_bo'], p['d_ng'], p['d_nb'], p['t_bo'],
                          p['t_n1g'], p['t_n1b'], p['t_n2g'], p['t_n2b'],
                          p['ff_b2']])                      # (9, 32)
    vecs = jnp.zeros((10, HIDDEN), jnp.float32)
    vecs = vecs.at[:9, :EMBED].set(vec_rows)
    vecs = vecs.at[V_FFB1, :].set(p['ff_b1'])               # (10, 128)

    return dict(w_self=w_self, w_ckv=w_ckv, w_cqoff1=w_cqoff1,
                w_ff2=w_ff2, vecs=vecs)


# -------------------- per-call wrapper (jitted) --------------------
@jax.jit
def decoder_block_pallas(x, value, key, trg_mask, src_mask, packed):
    N, S, E = x.shape
    assert (N, S, E) == (BATCH, SEQ, EMBED)
    ns = N * S

    def fold_bias(mask):
        # (N,S,S) mask -> (N*S, N*S) additive bias; off-diagonal (cross-batch)
        # blocks stay 0 in the block-diag placement and therefore get -1e20,
        # which reproduces the per-batch softmax exactly (masked terms exp to 0).
        rows = []
        for n in range(N):
            row = [mask[n] if m == n else jnp.zeros((S, S), mask.dtype)
                   for m in range(N)]
            rows.append(jnp.concatenate(row, axis=1))
        md = jnp.concatenate(rows, axis=0)
        return jnp.where(md == 0.0, -1e20, 0.0).astype(jnp.float32)

    bias2 = jnp.concatenate([fold_bias(trg_mask), fold_bias(src_mask)],
                            axis=1)                         # (16, 32)
    inp = jnp.concatenate([x.reshape(ns, E), key.reshape(ns, E),
                           value.reshape(ns, E)], axis=1)   # (16, 96)

    vmem = pl.BlockSpec(memory_space=pltpu.MemorySpace.VMEM)
    args = (inp, bias2, packed['w_self'], packed['w_ckv'],
            packed['w_cqoff1'], packed['w_ff2'], packed['vecs'])
    out2d = pl.pallas_call(
        decoder_block_kernel,
        out_shape=jax.ShapeDtypeStruct((ns, E), jnp.float32),
        in_specs=[vmem] * len(args),
        out_specs=vmem,
    )(*args)
    return out2d.reshape(N, S, E)


# -------------------- pure-JAX reference (PyTorch semantics) --------------------
def ref_self_attention(values, keys, query, mask, Wv, Wk, Wq, Wo, bo):
    N, vlen = values.shape[:2]
    klen, qlen = keys.shape[1], query.shape[1]
    v = values.reshape(N, vlen, HEADS, HEAD_DIM) @ Wv.T
    k = keys.reshape(N, klen, HEADS, HEAD_DIM) @ Wk.T
    q = query.reshape(N, qlen, HEADS, HEAD_DIM) @ Wq.T
    energy = jnp.einsum('nqhd,nkhd->nhqk', q, k)
    energy = jnp.where(mask[:, None, :, :] == 0.0, -1e20, energy)
    attn = jax.nn.softmax(energy / (EMBED ** 0.5), axis=-1)
    out = jnp.einsum('nhql,nlhd->nqhd', attn, v).reshape(N, qlen, EMBED)
    return out @ Wo.T + bo


def ref_layernorm(z, g, b, eps=1e-5):
    mu = z.mean(-1, keepdims=True)
    var = ((z - mu) ** 2).mean(-1, keepdims=True)
    return (z - mu) / jnp.sqrt(var + eps) * g + b


def ref_decoder_block(x, value, key, trg_mask, src_mask, p):
    a1 = ref_self_attention(x, x, x, trg_mask,
                            p['d_wv'], p['d_wk'], p['d_wq'], p['d_wo'], p['d_bo'])
    query = ref_layernorm(a1 + x, p['d_ng'], p['d_nb'])
    a2 = ref_self_attention(value, key, query, src_mask,
                            p['t_wv'], p['t_wk'], p['t_wq'], p['t_wo'], p['t_bo'])
    x2 = ref_layernorm(a2 + query, p['t_n1g'], p['t_n1b'])
    h = jax.nn.relu(x2 @ p['ff_w1'].T + p['ff_b1'])
    ff = h @ p['ff_w2'].T + p['ff_b2']
    return ref_layernorm(ff + x2, p['t_n2g'], p['t_n2b'])


# -------------------- deterministic parameter init --------------------
def init_params(key):
    ks = jax.random.split(key, 20)
    w = lambda k, shape, s=0.2: jax.random.normal(k, shape, jnp.float32) * s
    return dict(
        d_wv=w(ks[0], (HEAD_DIM, HEAD_DIM)),
        d_wk=w(ks[1], (HEAD_DIM, HEAD_DIM)),
        d_wq=w(ks[2], (HEAD_DIM, HEAD_DIM)),
        d_wo=w(ks[3], (EMBED, EMBED)),
        d_bo=w(ks[4], (EMBED,)),
        d_ng=1.0 + w(ks[5], (EMBED,), 0.1),
        d_nb=w(ks[6], (EMBED,), 0.1),
        t_wv=w(ks[7], (HEAD_DIM, HEAD_DIM)),
        t_wk=w(ks[8], (HEAD_DIM, HEAD_DIM)),
        t_wq=w(ks[9], (HEAD_DIM, HEAD_DIM)),
        t_wo=w(ks[10], (EMBED, EMBED)),
        t_bo=w(ks[11], (EMBED,)),
        t_n1g=1.0 + w(ks[12], (EMBED,), 0.1),
        t_n1b=w(ks[13], (EMBED,), 0.1),
        t_n2g=1.0 + w(ks[14], (EMBED,), 0.1),
        t_n2b=w(ks[15], (EMBED,), 0.1),
        ff_w1=w(ks[16], (HIDDEN, EMBED)),
        ff_b1=w(ks[17], (HIDDEN,)),
        ff_w2=w(ks[18], (EMBED, HIDDEN)),
        ff_b2=w(ks[19], (EMBED,)),
    )


if __name__ == "__main__":
    root = jax.random.PRNGKey(0)
    k_x, k_v, k_k, k_p = jax.random.split(root, 4)

    x = jax.random.normal(k_x, (BATCH, SEQ, EMBED), jnp.float32)
    value = jax.random.normal(k_v, (BATCH, SEQ, EMBED), jnp.float32)
    key_in = jax.random.normal(k_k, (BATCH, SEQ, EMBED), jnp.float32)
    trg_mask = jnp.tile(jnp.tril(jnp.ones((SEQ, SEQ), jnp.float32))[None],
                        (BATCH, 1, 1))
    src_mask = jnp.ones((BATCH, SEQ, SEQ), jnp.float32)
    params = init_params(k_p)

    # call-invariant weight packing done once (hoisted out of the per-step path)
    packed = jax.tree_util.tree_map(jax.block_until_ready, pack_params(params))

    out = decoder_block_pallas(x, value, key_in, trg_mask, src_mask, packed)
    out = jax.block_until_ready(out)

    # reference at full f32 matmul precision (kernel softmax is now exact, so
    # only MXU rounding remains as a difference source)
    with jax.default_matmul_precision("float32"):
        ref = ref_decoder_block(x, value, key_in, trg_mask, src_mask, params)
        ref = jax.block_until_ready(ref)

    assert out.shape == (BATCH, SEQ, EMBED)
    assert jnp.allclose(out, ref, atol=2e-3, rtol=2e-3), \
        f"max abs diff {jnp.max(jnp.abs(out - ref))}"

    print("KERNEL_OK")
</pallas_src>

<mosaic_0001>
module attributes {stable_mosaic.version = 11 : i64} {
  func.func @decoder_block_kernel(%arg0: memref<16x96xf32, #tpu.memory_space<vmem>>, %arg1: memref<16x32xf32, #tpu.memory_space<vmem>>, %arg2: memref<32x128xf32, #tpu.memory_space<vmem>>, %arg3: memref<64x64xf32, #tpu.memory_space<vmem>>, %arg4: memref<32x192xf32, #tpu.memory_space<vmem>>, %arg5: memref<128x32xf32, #tpu.memory_space<vmem>>, %arg6: memref<10x128xf32, #tpu.memory_space<vmem>>, %arg7: memref<16x32xf32, #tpu.memory_space<vmem>>) attributes {dimension_semantics = [], scalar_prefetch = 0 : i64, scratch_operands = 0 : i64, tpu.core_type = #tpu.core_type<tc>} {
    %c0 = arith.constant 0 : index
    %c0_0 = arith.constant 0 : index
    %0 = vector.load %arg0[%c0, %c0_0] : memref<16x96xf32, #tpu.memory_space<vmem>>, vector<16x96xf32>
    %1 = vector.extract_strided_slice %0 {offsets = [0, 0], sizes = [16, 32], strides = [1, 1]} : vector<16x96xf32> to vector<16x32xf32>
    %2 = vector.extract_strided_slice %0 {offsets = [0, 32], sizes = [16, 64], strides = [1, 1]} : vector<16x96xf32> to vector<16x64xf32>
    %c0_1 = arith.constant 0 : index
    %c0_2 = arith.constant 0 : index
    %3 = vector.load %arg1[%c0_1, %c0_2] : memref<16x32xf32, #tpu.memory_space<vmem>>, vector<16x32xf32>
    %4 = vector.extract_strided_slice %3 {offsets = [0, 0], sizes = [16, 16], strides = [1, 1]} : vector<16x32xf32> to vector<16x16xf32>
    %5 = vector.extract_strided_slice %3 {offsets = [0, 16], sizes = [16, 16], strides = [1, 1]} : vector<16x32xf32> to vector<16x16xf32>
    %c0_3 = arith.constant 0 : index
    %c0_4 = arith.constant 0 : index
    %6 = vector.load %arg6[%c0_3, %c0_4] : memref<10x128xf32, #tpu.memory_space<vmem>>, vector<10x128xf32>
    %7 = vector.extract_strided_slice %6 {offsets = [9, 0], sizes = [1, 128], strides = [1, 1]} : vector<10x128xf32> to vector<1x128xf32>
    %c0_5 = arith.constant 0 : index
    %c0_6 = arith.constant 0 : index
    %8 = vector.load %arg2[%c0_5, %c0_6] : memref<32x128xf32, #tpu.memory_space<vmem>>, vector<32x128xf32>
    %9 = vector.extract_strided_slice %8 {offsets = [0, 0], sizes = [32, 96], strides = [1, 1]} : vector<32x128xf32> to vector<32x96xf32>
    %cst = arith.constant dense<0.000000e+00> : vector<16x96xf32>
    %10 = tpu.matmul %1, %9, %cst {dimension_numbers = #tpu.dot_dimension_numbers<[1], [0], [0], [1], [0, 0, 1, 1], [], []>} : vector<16x32xf32>, vector<32x96xf32>, vector<16x96xf32> -> vector<16x96xf32>
    %11 = vector.extract_strided_slice %10 {offsets = [0, 0], sizes = [16, 32], strides = [1, 1]} : vector<16x96xf32> to vector<16x32xf32>
    %12 = vector.extract_strided_slice %10 {offsets = [0, 32], sizes = [16, 32], strides = [1, 1]} : vector<16x96xf32> to vector<16x32xf32>
    %13 = vector.extract_strided_slice %10 {offsets = [0, 64], sizes = [16, 32], strides = [1, 1]} : vector<16x96xf32> to vector<16x32xf32>
    %14 = vector.extract_strided_slice %8 {offsets = [0, 96], sizes = [32, 32], strides = [1, 1]} : vector<32x128xf32> to vector<32x32xf32>
    %15 = vector.extract_strided_slice %6 {offsets = [0, 0], sizes = [1, 32], strides = [1, 1]} : vector<10x128xf32> to vector<1x32xf32>
    %16 = vector.extract_strided_slice %11 {offsets = [0, 0], sizes = [16, 8], strides = [1, 1]} : vector<16x32xf32> to vector<16x8xf32>
    %17 = vector.extract_strided_slice %12 {offsets = [0, 0], sizes = [16, 8], strides = [1, 1]} : vector<16x32xf32> to vector<16x8xf32>
    %cst_7 = arith.constant dense<0.000000e+00> : vector<16x16xf32>
    %18 = tpu.matmul %16, %17, %cst_7 {dimension_numbers = #tpu.dot_dimension_numbers<[1], [1], [0], [0], [0, 0, 1, 0], [], []>} : vector<16x8xf32>, vector<16x8xf32>, vector<16x16xf32> -> vector<16x16xf32>
    %19 = arith.addf %18, %4 : vector<16x16xf32>
    %cst_8 = arith.constant dense<0xFF800000> : vector<16xf32>
    %20 = vector.multi_reduction <maximumf>, %19, %cst_8 [1] : vector<16x16xf32> to vector<16xf32>
    %21 = vector.shape_cast %20 : vector<16xf32> to vector<16x1xf32>
    %22 = vector.broadcast %21 : vector<16x1xf32> to vector<16x16xf32>
    %23 = arith.subf %19, %22 : vector<16x16xf32>
    %24 = math.exp %23 : vector<16x16xf32>
    %cst_9 = arith.constant dense<0.000000e+00> : vector<16xf32>
    %25 = vector.multi_reduction <add>, %24, %cst_9 [1] : vector<16x16xf32> to vector<16xf32>
    %26 = vector.shape_cast %25 : vector<16xf32> to vector<16x1xf32>
    %27 = vector.broadcast %26 : vector<16x1xf32> to vector<16x16xf32>
    %28 = arith.divf %24, %27 : vector<16x16xf32>
    %29 = vector.extract_strided_slice %13 {offsets = [0, 0], sizes = [16, 8], strides = [1, 1]} : vector<16x32xf32> to vector<16x8xf32>
    %cst_10 = arith.constant dense<0.000000e+00> : vector<16x8xf32>
    %30 = tpu.matmul %28, %29, %cst_10 {dimension_numbers = #tpu.dot_dimension_numbers<[1], [0], [0], [1], [0, 0, 1, 1], [], []>} : vector<16x16xf32>, vector<16x8xf32>, vector<16x8xf32> -> vector<16x8xf32>
    %31 = vector.extract_strided_slice %11 {offsets = [0, 8], sizes = [16, 8], strides = [1, 1]} : vector<16x32xf32> to vector<16x8xf32>
    %32 = vector.extract_strided_slice %12 {offsets = [0, 8], sizes = [16, 8], strides = [1, 1]} : vector<16x32xf32> to vector<16x8xf32>
    %cst_11 = arith.constant dense<0.000000e+00> : vector<16x16xf32>
    %33 = tpu.matmul %31, %32, %cst_11 {dimension_numbers = #tpu.dot_dimension_numbers<[1], [1], [0], [0], [0, 0, 1, 0], [], []>} : vector<16x8xf32>, vector<16x8xf32>, vector<16x16xf32> -> vector<16x16xf32>
    %34 = arith.addf %33, %4 : vector<16x16xf32>
    %cst_12 = arith.constant dense<0xFF800000> : vector<16xf32>
    %35 = vector.multi_reduction <maximumf>, %34, %cst_12 [1] : vector<16x16xf32> to vector<16xf32>
    %36 = vector.shape_cast %35 : vector<16xf32> to vector<16x1xf32>
    %37 = vector.broadcast %36 : vector<16x1xf32> to vector<16x16xf32>
    %38 = arith.subf %34, %37 : vector<16x16xf32>
    %39 = math.exp %38 : vector<16x16xf32>
    %cst_13 = arith.constant dense<0.000000e+00> : vector<16xf32>
    %40 = vector.multi_reduction <add>, %39, %cst_13 [1] : vector<16x16xf32> to vector<16xf32>
    %41 = vector.shape_cast %40 : vector<16xf32> to vector<16x1xf32>
    %42 = vector.broadcast %41 : vector<16x1xf32> to vector<16x16xf32>
    %43 = arith.divf %39, %42 : vector<16x16xf32>
    %44 = vector.extract_strided_slice %13 {offsets = [0, 8], sizes = [16, 8], strides = [1, 1]} : vector<16x32xf32> to vector<16x8xf32>
    %cst_14 = arith.constant dense<0.000000e+00> : vector<16x8xf32>
    %45 = tpu.matmul %43, %44, %cst_14 {dimension_numbers = #tpu.dot_dimension_numbers<[1], [0], [0], [1], [0, 0, 1, 1], [], []>} : vector<16x16xf32>, vector<16x8xf32>, vector<16x8xf32> -> vector<16x8xf32>
    %46 = vector.extract_strided_slice %11 {offsets = [0, 16], sizes = [16, 8], strides = [1, 1]} : vector<16x32xf32> to vector<16x8xf32>
    %47 = vector.extract_strided_slice %12 {offsets = [0, 16], sizes = [16, 8], strides = [1, 1]} : vector<16x32xf32> to vector<16x8xf32>
    %cst_15 = arith.constant dense<0.000000e+00> : vector<16x16xf32>
    %48 = tpu.matmul %46, %47, %cst_15 {dimension_numbers = #tpu.dot_dimension_numbers<[1], [1], [0], [0], [0, 0, 1, 0], [], []>} : vector<16x8xf32>, vector<16x8xf32>, vector<16x16xf32> -> vector<16x16xf32>
    %49 = arith.addf %48, %4 : vector<16x16xf32>
    %cst_16 = arith.constant dense<0xFF800000> : vector<16xf32>
    %50 = vector.multi_reduction <maximumf>, %49, %cst_16 [1] : vector<16x16xf32> to vector<16xf32>
    %51 = vector.shape_cast %50 : vector<16xf32> to vector<16x1xf32>
    %52 = vector.broadcast %51 : vector<16x1xf32> to vector<16x16xf32>
    %53 = arith.subf %49, %52 : vector<16x16xf32>
    %54 = math.exp %53 : vector<16x16xf32>
    %cst_17 = arith.constant dense<0.000000e+00> : vector<16xf32>
    %55 = vector.multi_reduction <add>, %54, %cst_17 [1] : vector<16x16xf32> to vector<16xf32>
    %56 = vector.shape_cast %55 : vector<16xf32> to vector<16x1xf32>
    %57 = vector.broadcast %56 : vector<16x1xf32> to vector<16x16xf32>
    %58 = arith.divf %54, %57 : vector<16x16xf32>
    %59 = vector.extract_strided_slice %13 {offsets = [0, 16], sizes = [16, 8], strides = [1, 1]} : vector<16x32xf32> to vector<16x8xf32>
    %cst_18 = arith.constant dense<0.000000e+00> : vector<16x8xf32>
    %60 = tpu.matmul %58, %59, %cst_18 {dimension_numbers = #tpu.dot_dimension_numbers<[1], [0], [0], [1], [0, 0, 1, 1], [], []>} : vector<16x16xf32>, vector<16x8xf32>, vector<16x8xf32> -> vector<16x8xf32>
    %61 = vector.extract_strided_slice %11 {offsets = [0, 24], sizes = [16, 8], strides = [1, 1]} : vector<16x32xf32> to vector<16x8xf32>
    %62 = vector.extract_strided_slice %12 {offsets = [0, 24], sizes = [16, 8], strides = [1, 1]} : vector<16x32xf32> to vector<16x8xf32>
    %cst_19 = arith.constant dense<0.000000e+00> : vector<16x16xf32>
    %63 = tpu.matmul %61, %62, %cst_19 {dimension_numbers = #tpu.dot_dimension_numbers<[1], [1], [0], [0], [0, 0, 1, 0], [], []>} : vector<16x8xf32>, vector<16x8xf32>, vector<16x16xf32> -> vector<16x16xf32>
    %64 = arith.addf %63, %4 : vector<16x16xf32>
    %cst_20 = arith.constant dense<0xFF800000> : vector<16xf32>
    %65 = vector.multi_reduction <maximumf>, %64, %cst_20 [1] : vector<16x16xf32> to vector<16xf32>
    %66 = vector.shape_cast %65 : vector<16xf32> to vector<16x1xf32>
    %67 = vector.broadcast %66 : vector<16x1xf32> to vector<16x16xf32>
    %68 = arith.subf %64, %67 : vector<16x16xf32>
    %69 = math.exp %68 : vector<16x16xf32>
    %cst_21 = arith.constant dense<0.000000e+00> : vector<16xf32>
    %70 = vector.multi_reduction <add>, %69, %cst_21 [1] : vector<16x16xf32> to vector<16xf32>
    %71 = vector.shape_cast %70 : vector<16xf32> to vector<16x1xf32>
    %72 = vector.broadcast %71 : vector<16x1xf32> to vector<16x16xf32>
    %73 = arith.divf %69, %72 : vector<16x16xf32>
    %74 = vector.extract_strided_slice %13 {offsets = [0, 24], sizes = [16, 8], strides = [1, 1]} : vector<16x32xf32> to vector<16x8xf32>
    %cst_22 = arith.constant dense<0.000000e+00> : vector<16x8xf32>
    %75 = tpu.matmul %73, %74, %cst_22 {dimension_numbers = #tpu.dot_dimension_numbers<[1], [0], [0], [1], [0, 0, 1, 1], [], []>} : vector<16x16xf32>, vector<16x8xf32>, vector<16x8xf32> -> vector<16x8xf32>
    %76 = tpu.concatenate %30, %45, %60, %75 in 1 : vector<16x8xf32>, vector<16x8xf32>, vector<16x8xf32>, vector<16x8xf32> -> vector<16x32xf32>
    %cst_23 = arith.constant dense<0.000000e+00> : vector<16x32xf32>
    %77 = tpu.matmul %76, %14, %cst_23 {dimension_numbers = #tpu.dot_dimension_numbers<[1], [0], [0], [1], [0, 0, 1, 1], [], []>} : vector<16x32xf32>, vector<32x32xf32>, vector<16x32xf32> -> vector<16x32xf32>
    %78 = vector.broadcast %15 : vector<1x32xf32> to vector<16x32xf32>
    %79 = arith.addf %77, %78 : vector<16x32xf32>
    %80 = arith.addf %79, %1 : vector<16x32xf32>
    %81 = vector.extract_strided_slice %6 {offsets = [1, 0], sizes = [1, 32], strides = [1, 1]} : vector<10x128xf32> to vector<1x32xf32>
    %82 = vector.extract_strided_slice %6 {offsets = [2, 0], sizes = [1, 32], strides = [1, 1]} : vector<10x128xf32> to vector<1x32xf32>
    %cst_24 = arith.constant dense<0.000000e+00> : vector<16xf32>
    %83 = vector.multi_reduction <add>, %80, %cst_24 [1] : vector<16x32xf32> to vector<16xf32>
    %84 = vector.shape_cast %83 : vector<16xf32> to vector<16x1xf32>
    %cst_25 = arith.constant 3.200000e+01 : f32
    %85 = vector.broadcast %cst_25 : f32 to vector<16x1xf32>
    %86 = arith.divf %84, %85 : vector<16x1xf32>
    %87 = vector.broadcast %86 : vector<16x1xf32> to vector<16x32xf32>
    %88 = arith.subf %80, %87 : vector<16x32xf32>
    %89 = arith.mulf %88, %88 : vector<16x32xf32>
    %cst_26 = arith.constant dense<0.000000e+00> : vector<16xf32>
    %90 = vector.multi_reduction <add>, %89, %cst_26 [1] : vector<16x32xf32> to vector<16xf32>
    %91 = vector.shape_cast %90 : vector<16xf32> to vector<16x1xf32>
    %cst_27 = arith.constant 3.200000e+01 : f32
    %92 = vector.broadcast %cst_27 : f32 to vector<16x1xf32>
    %93 = arith.divf %91, %92 : vector<16x1xf32>
    %94 = vector.broadcast %86 : vector<16x1xf32> to vector<16x32xf32>
    %95 = arith.subf %80, %94 : vector<16x32xf32>
    %cst_28 = arith.constant 9.99999974E-6 : f32
    %96 = vector.broadcast %cst_28 : f32 to vector<16x1xf32>
    %97 = arith.addf %93, %96 : vector<16x1xf32>
    %98 = math.rsqrt %97 : vector<16x1xf32>
    %99 = vector.broadcast %98 : vector<16x1xf32> to vector<16x32xf32>
    %100 = arith.mulf %95, %99 : vector<16x32xf32>
    %101 = vector.broadcast %81 : vector<1x32xf32> to vector<16x32xf32>
    %102 = arith.mulf %100, %101 : vector<16x32xf32>
    %103 = vector.broadcast %82 : vector<1x32xf32> to vector<16x32xf32>
    %104 = arith.addf %102, %103 : vector<16x32xf32>
    %c0_29 = arith.constant 0 : index
    %c0_30 = arith.constant 0 : index
    %105 = vector.load %arg4[%c0_29, %c0_30] : memref<32x192xf32, #tpu.memory_space<vmem>>, vector<32x192xf32>
    %106 = vector.extract_strided_slice %105 {offsets = [0, 128], sizes = [32, 32], strides = [1, 1]} : vector<32x192xf32> to vector<32x32xf32>
    %cst_31 = arith.constant dense<0.000000e+00> : vector<16x32xf32>
    %107 = tpu.matmul %104, %106, %cst_31 {dimension_numbers = #tpu.dot_dimension_numbers<[1], [0], [0], [1], [0, 0, 1, 1], [], []>} : vector<16x32xf32>, vector<32x32xf32>, vector<16x32xf32> -> vector<16x32xf32>
    %c0_32 = arith.constant 0 : index
    %c0_33 = arith.constant 0 : index
    %108 = vector.load %arg3[%c0_32, %c0_33] : memref<64x64xf32, #tpu.memory_space<vmem>>, vector<64x64xf32>
    %cst_34 = arith.constant dense<0.000000e+00> : vector<16x64xf32>
    %109 = tpu.matmul %2, %108, %cst_34 {dimension_numbers = #tpu.dot_dimension_numbers<[1], [0], [0], [1], [0, 0, 1, 1], [], []>} : vector<16x64xf32>, vector<64x64xf32>, vector<16x64xf32> -> vector<16x64xf32>
    %110 = vector.extract_strided_slice %109 {offsets = [0, 0], sizes = [16, 32], strides = [1, 1]} : vector<16x64xf32> to vector<16x32xf32>
    %111 = vector.extract_strided_slice %109 {offsets = [0, 32], sizes = [16, 32], strides = [1, 1]} : vector<16x64xf32> to vector<16x32xf32>
    %112 = vector.extract_strided_slice %105 {offsets = [0, 160], sizes = [32, 32], strides = [1, 1]} : vector<32x192xf32> to vector<32x32xf32>
    %113 = vector.extract_strided_slice %6 {offsets = [3, 0], sizes = [1, 32], strides = [1, 1]} : vector<10x128xf32> to vector<1x32xf32>
    %114 = vector.extract_strided_slice %107 {offsets = [0, 0], sizes = [16, 8], strides = [1, 1]} : vector<16x32xf32> to vector<16x8xf32>
    %115 = vector.extract_strided_slice %110 {offsets = [0, 0], sizes = [16, 8], strides = [1, 1]} : vector<16x32xf32> to vector<16x8xf32>
    %cst_35 = arith.constant dense<0.000000e+00> : vector<16x16xf32>
    %116 = tpu.matmul %114, %115, %cst_35 {dimension_numbers = #tpu.dot_dimension_numbers<[1], [1], [0], [0], [0, 0, 1, 0], [], []>} : vector<16x8xf32>, vector<16x8xf32>, vector<16x16xf32> -> vector<16x16xf32>
    %117 = arith.addf %116, %5 : vector<16x16xf32>
    %cst_36 = arith.constant dense<0xFF800000> : vector<16xf32>
    %118 = vector.multi_reduction <maximumf>, %117, %cst_36 [1] : vector<16x16xf32> to vector<16xf32>
    %119 = vector.shape_cast %118 : vector<16xf32> to vector<16x1xf32>
    %120 = vector.broadcast %119 : vector<16x1xf32> to vector<16x16xf32>
    %121 = arith.subf %117, %120 : vector<16x16xf32>
    %122 = math.exp %121 : vector<16x16xf32>
    %cst_37 = arith.constant dense<0.000000e+00> : vector<16xf32>
    %123 = vector.multi_reduction <add>, %122, %cst_37 [1] : vector<16x16xf32> to vector<16xf32>
    %124 = vector.shape_cast %123 : vector<16xf32> to vector<16x1xf32>
    %125 = vector.broadcast %124 : vector<16x1xf32> to vector<16x16xf32>
    %126 = arith.divf %122, %125 : vector<16x16xf32>
    %127 = vector.extract_strided_slice %111 {offsets = [0, 0], sizes = [16, 8], strides = [1, 1]} : vector<16x32xf32> to vector<16x8xf32>
    %cst_38 = arith.constant dense<0.000000e+00> : vector<16x8xf32>
    %128 = tpu.matmul %126, %127, %cst_38 {dimension_numbers = #tpu.dot_dimension_numbers<[1], [0], [0], [1], [0, 0, 1, 1], [], []>} : vector<16x16xf32>, vector<16x8xf32>, vector<16x8xf32> -> vector<16x8xf32>
    %129 = vector.extract_strided_slice %107 {offsets = [0, 8], sizes = [16, 8], strides = [1, 1]} : vector<16x32xf32> to vector<16x8xf32>
    %130 = vector.extract_strided_slice %110 {offsets = [0, 8], sizes = [16, 8], strides = [1, 1]} : vector<16x32xf32> to vector<16x8xf32>
    %cst_39 = arith.constant dense<0.000000e+00> : vector<16x16xf32>
    %131 = tpu.matmul %129, %130, %cst_39 {dimension_numbers = #tpu.dot_dimension_numbers<[1], [1], [0], [0], [0, 0, 1, 0], [], []>} : vector<16x8xf32>, vector<16x8xf32>, vector<16x16xf32> -> vector<16x16xf32>
    %132 = arith.addf %131, %5 : vector<16x16xf32>
    %cst_40 = arith.constant dense<0xFF800000> : vector<16xf32>
    %133 = vector.multi_reduction <maximumf>, %132, %cst_40 [1] : vector<16x16xf32> to vector<16xf32>
    %134 = vector.shape_cast %133 : vector<16xf32> to vector<16x1xf32>
    %135 = vector.broadcast %134 : vector<16x1xf32> to vector<16x16xf32>
    %136 = arith.subf %132, %135 : vector<16x16xf32>
    %137 = math.exp %136 : vector<16x16xf32>
    %cst_41 = arith.constant dense<0.000000e+00> : vector<16xf32>
    %138 = vector.multi_reduction <add>, %137, %cst_41 [1] : vector<16x16xf32> to vector<16xf32>
    %139 = vector.shape_cast %138 : vector<16xf32> to vector<16x1xf32>
    %140 = vector.broadcast %139 : vector<16x1xf32> to vector<16x16xf32>
    %141 = arith.divf %137, %140 : vector<16x16xf32>
    %142 = vector.extract_strided_slice %111 {offsets = [0, 8], sizes = [16, 8], strides = [1, 1]} : vector<16x32xf32> to vector<16x8xf32>
    %cst_42 = arith.constant dense<0.000000e+00> : vector<16x8xf32>
    %143 = tpu.matmul %141, %142, %cst_42 {dimension_numbers = #tpu.dot_dimension_numbers<[1], [0], [0], [1], [0, 0, 1, 1], [], []>} : vector<16x16xf32>, vector<16x8xf32>, vector<16x8xf32> -> vector<16x8xf32>
    %144 = vector.extract_strided_slice %107 {offsets = [0, 16], sizes = [16, 8], strides = [1, 1]} : vector<16x32xf32> to vector<16x8xf32>
    %145 = vector.extract_strided_slice %110 {offsets = [0, 16], sizes = [16, 8], strides = [1, 1]} : vector<16x32xf32> to vector<16x8xf32>
    %cst_43 = arith.constant dense<0.000000e+00> : vector<16x16xf32>
    %146 = tpu.matmul %144, %145, %cst_43 {dimension_numbers = #tpu.dot_dimension_numbers<[1], [1], [0], [0], [0, 0, 1, 0], [], []>} : vector<16x8xf32>, vector<16x8xf32>, vector<16x16xf32> -> vector<16x16xf32>
    %147 = arith.addf %146, %5 : vector<16x16xf32>
    %cst_44 = arith.constant dense<0xFF800000> : vector<16xf32>
    %148 = vector.multi_reduction <maximumf>, %147, %cst_44 [1] : vector<16x16xf32> to vector<16xf32>
    %149 = vector.shape_cast %148 : vector<16xf32> to vector<16x1xf32>
    %150 = vector.broadcast %149 : vector<16x1xf32> to vector<16x16xf32>
    %151 = arith.subf %147, %150 : vector<16x16xf32>
    %152 = math.exp %151 : vector<16x16xf32>
    %cst_45 = arith.constant dense<0.000000e+00> : vector<16xf32>
    %153 = vector.multi_reduction <add>, %152, %cst_45 [1] : vector<16x16xf32> to vector<16xf32>
    %154 = vector.shape_cast %153 : vector<16xf32> to vector<16x1xf32>
    %155 = vector.broadcast %154 : vector<16x1xf32> to vector<16x16xf32>
    %156 = arith.divf %152, %155 : vector<16x16xf32>
    %157 = vector.extract_strided_slice %111 {offsets = [0, 16], sizes = [16, 8], strides = [1, 1]} : vector<16x32xf32> to vector<16x8xf32>
    %cst_46 = arith.constant dense<0.000000e+00> : vector<16x8xf32>
    %158 = tpu.matmul %156, %157, %cst_46 {dimension_numbers = #tpu.dot_dimension_numbers<[1], [0], [0], [1], [0, 0, 1, 1], [], []>} : vector<16x16xf32>, vector<16x8xf32>, vector<16x8xf32> -> vector<16x8xf32>
    %159 = vector.extract_strided_slice %107 {offsets = [0, 24], sizes = [16, 8], strides = [1, 1]} : vector<16x32xf32> to vector<16x8xf32>
    %160 = vector.extract_strided_slice %110 {offsets = [0, 24], sizes = [16, 8], strides = [1, 1]} : vector<16x32xf32> to vector<16x8xf32>
    %cst_47 = arith.constant dense<0.000000e+00> : vector<16x16xf32>
    %161 = tpu.matmul %159, %160, %cst_47 {dimension_numbers = #tpu.dot_dimension_numbers<[1], [1], [0], [0], [0, 0, 1, 0], [], []>} : vector<16x8xf32>, vector<16x8xf32>, vector<16x16xf32> -> vector<16x16xf32>
    %162 = arith.addf %161, %5 : vector<16x16xf32>
    %cst_48 = arith.constant dense<0xFF800000> : vector<16xf32>
    %163 = vector.multi_reduction <maximumf>, %162, %cst_48 [1] : vector<16x16xf32> to vector<16xf32>
    %164 = vector.shape_cast %163 : vector<16xf32> to vector<16x1xf32>
    %165 = vector.broadcast %164 : vector<16x1xf32> to vector<16x16xf32>
    %166 = arith.subf %162, %165 : vector<16x16xf32>
    %167 = math.exp %166 : vector<16x16xf32>
    %cst_49 = arith.constant dense<0.000000e+00> : vector<16xf32>
    %168 = vector.multi_reduction <add>, %167, %cst_49 [1] : vector<16x16xf32> to vector<16xf32>
    %169 = vector.shape_cast %168 : vector<16xf32> to vector<16x1xf32>
    %170 = vector.broadcast %169 : vector<16x1xf32> to vector<16x16xf32>
    %171 = arith.divf %167, %170 : vector<16x16xf32>
    %172 = vector.extract_strided_slice %111 {offsets = [0, 24], sizes = [16, 8], strides = [1, 1]} : vector<16x32xf32> to vector<16x8xf32>
    %cst_50 = arith.constant dense<0.000000e+00> : vector<16x8xf32>
    %173 = tpu.matmul %171, %172, %cst_50 {dimension_numbers = #tpu.dot_dimension_numbers<[1], [0], [0], [1], [0, 0, 1, 1], [], []>} : vector<16x16xf32>, vector<16x8xf32>, vector<16x8xf32> -> vector<16x8xf32>
    %174 = tpu.concatenate %128, %143, %158, %173 in 1 : vector<16x8xf32>, vector<16x8xf32>, vector<16x8xf32>, vector<16x8xf32> -> vector<16x32xf32>
    %cst_51 = arith.constant dense<0.000000e+00> : vector<16x32xf32>
    %175 = tpu.matmul %174, %112, %cst_51 {dimension_numbers = #tpu.dot_dimension_numbers<[1], [0], [0], [1], [0, 0, 1, 1], [], []>} : vector<16x32xf32>, vector<32x32xf32>, vector<16x32xf32> -> vector<16x32xf32>
    %176 = vector.broadcast %113 : vector<1x32xf32> to vector<16x32xf32>
    %177 = arith.addf %175, %176 : vector<16x32xf32>
    %178 = arith.addf %177, %104 : vector<16x32xf32>
    %179 = vector.extract_strided_slice %6 {offsets = [4, 0], sizes = [1, 32], strides = [1, 1]} : vector<10x128xf32> to vector<1x32xf32>
    %180 = vector.extract_strided_slice %6 {offsets = [5, 0], sizes = [1, 32], strides = [1, 1]} : vector<10x128xf32> to vector<1x32xf32>
    %cst_52 = arith.constant dense<0.000000e+00> : vector<16xf32>
    %181 = vector.multi_reduction <add>, %178, %cst_52 [1] : vector<16x32xf32> to vector<16xf32>
    %182 = vector.shape_cast %181 : vector<16xf32> to vector<16x1xf32>
    %cst_53 = arith.constant 3.200000e+01 : f32
    %183 = vector.broadcast %cst_53 : f32 to vector<16x1xf32>
    %184 = arith.divf %182, %183 : vector<16x1xf32>
    %185 = vector.broadcast %184 : vector<16x1xf32> to vector<16x32xf32>
    %186 = arith.subf %178, %185 : vector<16x32xf32>
    %187 = arith.mulf %186, %186 : vector<16x32xf32>
    %cst_54 = arith.constant dense<0.000000e+00> : vector<16xf32>
    %188 = vector.multi_reduction <add>, %187, %cst_54 [1] : vector<16x32xf32> to vector<16xf32>
    %189 = vector.shape_cast %188 : vector<16xf32> to vector<16x1xf32>
    %cst_55 = arith.constant 3.200000e+01 : f32
    %190 = vector.broadcast %cst_55 : f32 to vector<16x1xf32>
    %191 = arith.divf %189, %190 : vector<16x1xf32>
    %192 = vector.broadcast %184 : vector<16x1xf32> to vector<16x32xf32>
    %193 = arith.subf %178, %192 : vector<16x32xf32>
    %cst_56 = arith.constant 9.99999974E-6 : f32
    %194 = vector.broadcast %cst_56 : f32 to vector<16x1xf32>
    %195 = arith.addf %191, %194 : vector<16x1xf32>
    %196 = math.rsqrt %195 : vector<16x1xf32>
    %197 = vector.broadcast %196 : vector<16x1xf32> to vector<16x32xf32>
    %198 = arith.mulf %193, %197 : vector<16x32xf32>
    %199 = vector.broadcast %179 : vector<1x32xf32> to vector<16x32xf32>
    %200 = arith.mulf %198, %199 : vector<16x32xf32>
    %201 = vector.broadcast %180 : vector<1x32xf32> to vector<16x32xf32>
    %202 = arith.addf %200, %201 : vector<16x32xf32>
    %203 = vector.extract_strided_slice %105 {offsets = [0, 0], sizes = [32, 128], strides = [1, 1]} : vector<32x192xf32> to vector<32x128xf32>
    %cst_57 = arith.constant dense<0.000000e+00> : vector<16x128xf32>
    %204 = tpu.matmul %202, %203, %cst_57 {dimension_numbers = #tpu.dot_dimension_numbers<[1], [0], [0], [1], [0, 0, 1, 1], [], []>} : vector<16x32xf32>, vector<32x128xf32>, vector<16x128xf32> -> vector<16x128xf32>
    %205 = vector.broadcast %7 : vector<1x128xf32> to vector<16x128xf32>
    %206 = arith.addf %204, %205 : vector<16x128xf32>
    %cst_58 = arith.constant 0.000000e+00 : f32
    %207 = vector.broadcast %cst_58 : f32 to vector<16x128xf32>
    %208 = arith.maximumf %206, %207 : vector<16x128xf32>
    %c0_59 = arith.constant 0 : index
    %c0_60 = arith.constant 0 : index
    %209 = vector.load %arg5[%c0_59, %c0_60] : memref<128x32xf32, #tpu.memory_space<vmem>>, vector<128x32xf32>
    %cst_61 = arith.constant dense<0.000000e+00> : vector<16x32xf32>
    %210 = tpu.matmul %208, %209, %cst_61 {dimension_numbers = #tpu.dot_dimension_numbers<[1], [0], [0], [1], [0, 0, 1, 1], [], []>} : vector<16x128xf32>, vector<128x32xf32>, vector<16x32xf32> -> vector<16x32xf32>
    %211 = vector.extract_strided_slice %6 {offsets = [8, 0], sizes = [1, 32], strides = [1, 1]} : vector<10x128xf32> to vector<1x32xf32>
    %212 = vector.broadcast %211 : vector<1x32xf32> to vector<16x32xf32>
    %213 = arith.addf %210, %212 : vector<16x32xf32>
    %214 = arith.addf %213, %202 : vector<16x32xf32>
    %215 = vector.extract_strided_slice %6 {offsets = [6, 0], sizes = [1, 32], strides = [1, 1]} : vector<10x128xf32> to vector<1x32xf32>
    %216 = vector.extract_strided_slice %6 {offsets = [7, 0], sizes = [1, 32], strides = [1, 1]} : vector<10x128xf32> to vector<1x32xf32>
    %cst_62 = arith.constant dense<0.000000e+00> : vector<16xf32>
    %217 = vector.multi_reduction <add>, %214, %cst_62 [1] : vector<16x32xf32> to vector<16xf32>
    %218 = vector.shape_cast %217 : vector<16xf32> to vector<16x1xf32>
    %cst_63 = arith.constant 3.200000e+01 : f32
    %219 = vector.broadcast %cst_63 : f32 to vector<16x1xf32>
    %220 = arith.divf %218, %219 : vector<16x1xf32>
    %221 = vector.broadcast %220 : vector<16x1xf32> to vector<16x32xf32>
    %222 = arith.subf %214, %221 : vector<16x32xf32>
    %223 = arith.mulf %222, %222 : vector<16x32xf32>
    %cst_64 = arith.constant dense<0.000000e+00> : vector<16xf32>
    %224 = vector.multi_reduction <add>, %223, %cst_64 [1] : vector<16x32xf32> to vector<16xf32>
    %225 = vector.shape_cast %224 : vector<16xf32> to vector<16x1xf32>
    %cst_65 = arith.constant 3.200000e+01 : f32
    %226 = vector.broadcast %cst_65 : f32 to vector<16x1xf32>
    %227 = arith.divf %225, %226 : vector<16x1xf32>
    %228 = vector.broadcast %220 : vector<16x1xf32> to vector<16x32xf32>
    %229 = arith.subf %214, %228 : vector<16x32xf32>
    %cst_66 = arith.constant 9.99999974E-6 : f32
    %230 = vector.broadcast %cst_66 : f32 to vector<16x1xf32>
    %231 = arith.addf %227, %230 : vector<16x1xf32>
    %232 = math.rsqrt %231 : vector<16x1xf32>
    %233 = vector.broadcast %232 : vector<16x1xf32> to vector<16x32xf32>
    %234 = arith.mulf %229, %233 : vector<16x32xf32>
    %235 = vector.broadcast %215 : vector<1x32xf32> to vector<16x32xf32>
    %236 = arith.mulf %234, %235 : vector<16x32xf32>
    %237 = vector.broadcast %216 : vector<1x32xf32> to vector<16x32xf32>
    %238 = arith.addf %236, %237 : vector<16x32xf32>
    %c0_67 = arith.constant 0 : index
    %c0_68 = arith.constant 0 : index
    %239 = vector.load %arg7[%c0_67, %c0_68] : memref<16x32xf32, #tpu.memory_space<vmem>>, vector<16x32xf32>
    tpu.vector_store %arg7[%c0_67, %c0_68], %238 {strides = array<i32>} : memref<16x32xf32, #tpu.memory_space<vmem>>, vector<16x32xf32>,
    return
  }
}

</mosaic_0001>

<llo_original>
// kernel: decoder_block_pallas.1
$region0: #{decoder_block_pallas.1}
  #allocation0 [shape = 'u32[]', space=smem, size = 0x4, offset = 0x4, fixed_abs, tag = 'smem constant byte address 0x4 - core index']
  #allocation1 [shape = 'u32[144,128]{1,0:T(1,128)}', space=vmem, size = 0x12000, scoped, tag = 'internal scratch']
  %s0 = inlined_call_operand.vmem [shape: f32[16,96], index: 0, kind: input, shape index: {}]
  %s1 = inlined_call_operand.vmem [shape: f32[16,32], index: 1, kind: input, shape index: {}]
  %s2 = inlined_call_operand.vmem [shape: f32[32,128], index: 2, kind: input, shape index: {}]
  %s3 = inlined_call_operand.vmem [shape: f32[64,64], index: 3, kind: input, shape index: {}]
  %s4 = inlined_call_operand.vmem [shape: f32[32,192], index: 4, kind: input, shape index: {}]
  %s5 = inlined_call_operand.vmem [shape: f32[128,32], index: 5, kind: input, shape index: {}]
  %s6 = inlined_call_operand.vmem [shape: f32[10,128], index: 6, kind: input, shape index: {}]
  %s7 = inlined_call_operand.hbm [shape: f32[16,32], index: 7, kind: output, shape index: {}]
  %s8 = sld [smem:[#allocation0]]
  $region38: #{decoder_block_pallas.1} parent=0
    _
  %s10 = ssub.s32 1, %s8
  %s11 = scalar_select 0, %s10, %s8
  $region1: #{decoder_block_pallas.1} parent=0
    #allocation2 [shape = 'u8[8192]{0}', space=vmem, size = 0x2000, scoped, tag = 'output window, operand 0, single buffered']
    #allocation3 [shape = 's32[1]{0}', space=sflag, size = 0x4, scoped, tag = 'scoped memory for decoder_block_pallas.1']
    %12 = vsyncpa [#allocation3], 0
    // Predicated region
    $region2: #{decoder_block_pallas.1} parent=1 // pred_check
      _
    $region3: #{decoder_block_pallas.1} parent=1 // pred_check_branch
      %14 = sbr.rel (0) target = $region5
    $region4: #{decoder_block_pallas.1} parent=1 // pred_region
      _
    $region5: #{decoder_block_pallas.1} parent=1 // pred_fallthru
      _
    // Predicated region
    $region6: #{decoder_block_pallas.1} parent=1 // pred_check
      _
    $region7: #{decoder_block_pallas.1} parent=1 // pred_check_branch
      %16 = sbr.rel (0) target = $region9
    $region8: #{decoder_block_pallas.1} parent=1 // pred_region
      _
    $region9: #{decoder_block_pallas.1} parent=1 // pred_fallthru
      _
    // Predicated region
    $region10: #{decoder_block_pallas.1} parent=1 // pred_check
      _
    $region11: #{decoder_block_pallas.1} parent=1 // pred_check_branch
      %18 = sbr.rel (0) target = $region13
    $region12: #{decoder_block_pallas.1} parent=1 // pred_region
      _
    $region13: #{decoder_block_pallas.1} parent=1 // pred_fallthru
      _
    // Predicated region
    $region14: #{decoder_block_pallas.1} parent=1 // pred_check
      _
    $region15: #{decoder_block_pallas.1} parent=1 // pred_check_branch
      %20 = sbr.rel (0) target = $region17
    $region16: #{decoder_block_pallas.1} parent=1 // pred_region
      _
    $region17: #{decoder_block_pallas.1} parent=1 // pred_fallthru
      _
    // Predicated region
    $region18: #{decoder_block_pallas.1} parent=1 // pred_check
      _
    $region19: #{decoder_block_pallas.1} parent=1 // pred_check_branch
      %22 = sbr.rel (0) target = $region21
    $region20: #{decoder_block_pallas.1} parent=1 // pred_region
      _
    $region21: #{decoder_block_pallas.1} parent=1 // pred_fallthru
      _
    // Predicated region
    $region22: #{decoder_block_pallas.1} parent=1 // pred_check
      _
    $region23: #{decoder_block_pallas.1} parent=1 // pred_check_branch
      %24 = sbr.rel (0) target = $region25
    $region24: #{decoder_block_pallas.1} parent=1 // pred_region
      _
    $region25: #{decoder_block_pallas.1} parent=1 // pred_fallthru
      _
    // Predicated region
    $region26: #{decoder_block_pallas.1} parent=1 // pred_check
      _
    $region27: #{decoder_block_pallas.1} parent=1 // pred_check_branch
      %26 = sbr.rel (0) target = $region29
    $region28: #{decoder_block_pallas.1} parent=1 // pred_region
      _
    $region29: #{decoder_block_pallas.1} parent=1 // pred_fallthru
      _
    %v27 = vld [vmem:[%s0] sm:$0xff]
    %v28 = vld [vmem:[%s0 + $0x8] sm:$0xff]
    %v29 = vld [vmem:[%s1] sm:$0xff]
    %v30 = vld [vmem:[%s1 + $0x8] sm:$0xff]
    %v31 = vld [vmem:[%s6] sm:$0xff]
    %v32 = vld [vmem:[%s6 + $0x8] sm:$0x3]
    %v33 = vld [vmem:[%s2] sm:$0xff]
    %v34 = vld [vmem:[%s2 + $0x8] sm:$0xff]
    %v35 = vld [vmem:[%s2 + $0x10] sm:$0xff]
    %v36 = vld [vmem:[%s2 + $0x18] sm:$0xff]
    %vm37 = vcmask 261120
    %v39 = vsel %vm37, %v27, 0
    %v42 = vsel %vm37, %v28, 0
    %44 = vmatprep.subr.mxu0 0.0
    %45 = vmatpush1.msra.mxu0 %v33
    %46 = vmatprep.subr.mxu0 0.0
    %47 = vmatpush1.msra.mxu0 %v34
    %48 = vmatprep.subr.mxu0 0.0
    %49 = vmatpush1.msra.mxu0 %v35
    %50 = vmatprep.subr.mxu0 0.0
    %51 = vmatpush1.msra.mxu0 %v36
    %52 = vmatprep.subr.mxu0 0.0
    %53 = vmatpush1.msra.mxu0 0.0
    %54 = vmatprep.subr.mxu0 0.0
    %55 = vmatpush1.msra.mxu0 0.0
    %56 = vmatprep.subr.mxu0 0.0
    %57 = vmatpush1.msra.mxu0 0.0
    %58 = vmatprep.subr.mxu0 0.0
    %59 = vmatpush1.msra.mxu0 0.0
    %60 = vmatprep.subr.mxu0 0.0
    %61 = vmatpush1.msra.mxu0 0.0
    %62 = vmatprep.subr.mxu0 0.0
    %63 = vmatpush1.msra.mxu0 0.0
    %64 = vmatprep.subr.mxu0 0.0
    %65 = vmatpush1.msra.mxu0 0.0
    %66 = vmatprep.subr.mxu0 0.0
    %67 = vmatpush1.msra.mxu0 0.0
    %68 = vmatprep.subr.mxu0 0.0
    %69 = vmatpush1.msra.mxu0 0.0
    %70 = vmatprep.subr.mxu0 0.0
    %71 = vmatpush1.msra.mxu0 0.0
    %72 = vmatprep.subr.mxu0 0.0
    %73 = vmatpush1.msra.mxu0 0.0
    %74 = vmatprep.subr.mxu0 0.0
    %75 = vmatpush1.msra.mxu0 0.0
    %76 = vmatprep.subr.mxu0 0.0
    %77 = vmatpush1.msra.mxu0 0.0
    %78 = vmatprep.subr.mxu0 0.0
    %79 = vmatpush1.msra.mxu0 0.0
    %80 = vmatprep.subr.mxu0 0.0
    %81 = vmatpush1.msra.mxu0 0.0
    %82 = vmatprep.subr.mxu0 0.0
    %83 = vmatpush1.msra.mxu0 0.0
    %84 = vmatprep.subr.mxu0 0.0
    %85 = vmatpush1.msra.mxu0 0.0
    %86 = vmatprep.subr.mxu0 0.0
    %87 = vmatpush1.msra.mxu0 0.0
    %88 = vmatprep.subr.mxu0 0.0
    %89 = vmatpush1.msra.mxu0 0.0
    %90 = vmatprep.subr.mxu0 0.0
    %91 = vmatpush1.msra.mxu0 0.0
    %92 = vmatprep.subr.mxu0 0.0
    %93 = vmatpush1.msra.mxu0 0.0
    %94 = vmatprep.subr.mxu0 0.0
    %95 = vmatpush1.msra.mxu0 0.0
    %96 = vmatprep.subr.mxu0 0.0
    %97 = vmatpush1.msra.mxu0 0.0
    %98 = vmatprep.subr.mxu0 0.0
    %99 = vmatpush1.msra.mxu0 0.0
    %100 = vmatprep.subr.mxu0 0.0
    %101 = vmatpush1.msra.mxu0 0.0
    %102 = vmatprep.subr.mxu0 0.0
    %103 = vmatpush1.msra.mxu0 0.0
    %104 = vmatprep.subr.mxu0 0.0
    %105 = vmatpush1.msra.mxu0 0.0
    %106 = vmatprep.subr.mxu0 0.0
    %107 = vmatpush1.msra.mxu0 0.0
    %108 = vmatprep.mubr.f32.mxu0 0.0
    %109 = vmatmul.mubr.f32.gmra.mrb[0].mxu0 %v39
    %v110 = vpop.f32.mrb[0].mxu0
    %v111 = vadd.f32 0.0, %v110
    %v112 = vpop.f32.mrb[0].mxu0
    %113 = vmatprep.mubr.f32.mxu0 0.0
    %114 = vmatmul.mubr.f32.gmra.mrb[0].mxu0 %v42
    %v115 = vpop.f32.mrb[0].mxu0
    %v116 = vadd.f32 0.0, %v115
    %v117 = vpop.f32.mrb[0].mxu0
    %118 = vdwg.mxu0
    %121 = vrot.lane.b32.xlu0 %v111, 96
    %v122 = vpop.permute.xlu0 %121
    %123 = vrot.lane.b32.xlu0 %v116, 96
    %v124 = vpop.permute.xlu0 %123
    %vm125 = vcmask 64512
    %v126 = vsel %vm125, %v111, 0
    %v128 = vsel %vm125, %v116, 0
    %v130 = vsel %vm125, %v122, 0
    %v132 = vsel %vm125, %v124, 0
    %134 = vmatprep.subr.mxu0 0.0
    %135 = vmatpush1.xpose.msra.mxu0 %v130
    %136 = vmatprep.subr.mxu0 0.0
    %137 = vmatpush1.xpose.msra.mxu0 %v132
    %138 = vmatprep.subr.mxu0 0.0
    %139 = vmatpush1.xpose.msra.mxu0 0.0
    %140 = vmatprep.subr.mxu0 0.0
    %141 = vmatpush1.xpose.msra.mxu0 0.0
    %142 = vmatprep.subr.mxu0 0.0
    %143 = vmatpush1.xpose.msra.mxu0 0.0
    %144 = vmatprep.subr.mxu0 0.0
    %145 = vmatpush1.xpose.msra.mxu0 0.0
    %146 = vmatprep.subr.mxu0 0.0
    %147 = vmatpush1.xpose.msra.mxu0 0.0
    %148 = vmatprep.subr.mxu0 0.0
    %149 = vmatpush1.xpose.msra.mxu0 0.0
    %150 = vmatprep.subr.mxu0 0.0
    %151 = vmatpush1.xpose.msra.mxu0 0.0
    %152 = vmatprep.subr.mxu0 0.0
    %153 = vmatpush1.xpose.msra.mxu0 0.0
    %154 = vmatprep.subr.mxu0 0.0
    %155 = vmatpush1.xpose.msra.mxu0 0.0
    %156 = vmatprep.subr.mxu0 0.0
    %157 = vmatpush1.xpose.msra.mxu0 0.0
    %158 = vmatprep.subr.mxu0 0.0
    %159 = vmatpush1.xpose.msra.mxu0 0.0
    %160 = vmatprep.subr.mxu0 0.0
    %161 = vmatpush1.xpose.msra.mxu0 0.0
    %162 = vmatprep.subr.mxu0 0.0
    %163 = vmatpush1.xpose.msra.mxu0 0.0
    %164 = vmatprep.subr.mxu0 0.0
    %165 = vmatpush1.xpose.msra.mxu0 0.0
    %166 = vmatprep.subr.mxu0 0.0
    %167 = vmatpush1.xpose.msra.mxu0 0.0
    %168 = vmatprep.subr.mxu0 0.0
    %169 = vmatpush1.xpose.msra.mxu0 0.0
    %170 = vmatprep.subr.mxu0 0.0
    %171 = vmatpush1.xpose.msra.mxu0 0.0
    %172 = vmatprep.subr.mxu0 0.0
    %173 = vmatpush1.xpose.msra.mxu0 0.0
    %174 = vmatprep.subr.mxu0 0.0
    %175 = vmatpush1.xpose.msra.mxu0 0.0
    %176 = vmatprep.subr.mxu0 0.0
    %177 = vmatpush1.xpose.msra.mxu0 0.0
    %178 = vmatprep.subr.mxu0 0.0
    %179 = vmatpush1.xpose.msra.mxu0 0.0
    %180 = vmatprep.subr.mxu0 0.0
    %181 = vmatpush1.xpose.msra.mxu0 0.0
    %182 = vmatprep.subr.mxu0 0.0
    %183 = vmatpush1.xpose.msra.mxu0 0.0
    %184 = vmatprep.subr.mxu0 0.0
    %185 = vmatpush1.xpose.msra.mxu0 0.0
    %186 = vmatprep.subr.mxu0 0.0
    %187 = vmatpush1.xpose.msra.mxu0 0.0
    %188 = vmatprep.subr.mxu0 0.0
    %189 = vmatpush1.xpose.msra.mxu0 0.0
    %190 = vmatprep.subr.mxu0 0.0
    %191 = vmatpush1.xpose.msra.mxu0 0.0
    %192 = vmatprep.subr.mxu0 0.0
    %193 = vmatpush1.xpose.msra.mxu0 0.0
    %194 = vmatprep.subr.mxu0 0.0
    %195 = vmatpush1.xpose.msra.mxu0 0.0
    %196 = vmatprep.subr.mxu0 0.0
    %197 = vmatpush1.xpose.msra.mxu0 0.0
    %198 = vmatprep.mubr.f32.mxu0 0.0
    %199 = vmatmul.mubr.f32.gmra.mrb[0].mxu0 %v126
    %v200 = vpop.f32.mrb[0].mxu0
    %v201 = vadd.f32 %v29, %v200
    %v202 = vpop.f32.mrb[0].mxu0
    %203 = vmatprep.mubr.f32.mxu0 0.0
    %204 = vmatmul.mubr.f32.gmra.mrb[0].mxu0 %v128
    %v205 = vpop.f32.mrb[0].mxu0
    %v206 = vadd.f32 %v30, %v205
    %v207 = vpop.f32.mrb[0].mxu0
    %208 = vdwg.mxu0
    %vm209 = vcmask 130048
    %v210 = vsel %vm209, %v201, -inf
    %211 = vmax.xlane.f32.xlu0 %v210
    %v212 = vpop.xlane.xlu0 %211
    %v213 = vsel %vm209, %v206, -inf
    %214 = vmax.xlane.f32.xlu0 %v213
    %v215 = vpop.xlane.xlu0 %214
    %v216 = vsub.f32 %v201, %v212
    %v217 = vsub.f32 %v206, %v215
    %v218 = vmul.f32 %v216, 1.442695
    %v219 = vpow.pop %v218
    %v220 = vmul.f32 %v217, 1.442695
    %v221 = vpow.pop %v220
    %v222 = vsel %vm209, %v219, 0.0
    %223 = vadd.xlane.f32.xlu0 %v222
    %v224 = vpop.xlane.xlu0 %223
    %v225 = vsel %vm209, %v221, 0.0
    %226 = vadd.xlane.f32.xlu0 %v225
    %v227 = vpop.xlane.xlu0 %226
    %v228 = vrcp.pop %v224
    %v229 = vmul.f32 %v219, %v228
    %v230 = vrcp.pop %v227
    %v231 = vmul.f32 %v221, %v230
    %232 = vrot.lane.b32.xlu0 %v111, 64
    %v233 = vpop.permute.xlu0 %232
    %234 = vrot.lane.b32.xlu0 %v116, 64
    %v235 = vpop.permute.xlu0 %234
    %v239 = vsel %vm209, %v229, 0
    %v242 = vsel %vm209, %v231, 0
    %244 = vmatprep.subr.mxu0 0.0
    %245 = vmatpush1.msra.mxu0 %v233
    %246 = vmatprep.subr.mxu0 0.0
    %247 = vmatpush1.msra.mxu0 %v235
    %248 = vmatprep.subr.mxu0 0.0
    %249 = vmatpush1.msra.mxu0 0.0
    %250 = vmatprep.subr.mxu0 0.0
    %251 = vmatpush1.msra.mxu0 0.0
    %252 = vmatprep.subr.mxu0 0.0
    %253 = vmatpush1.msra.mxu0 0.0
    %254 = vmatprep.subr.mxu0 0.0
    %255 = vmatpush1.msra.mxu0 0.0
    %256 = vmatprep.subr.mxu0 0.0
    %257 = vmatpush1.msra.mxu0 0.0
    %258 = vmatprep.subr.mxu0 0.0
    %259 = vmatpush1.msra.mxu0 0.0
    %260 = vmatprep.subr.mxu0 0.0
    %261 = vmatpush1.msra.mxu0 0.0
    %262 = vmatprep.subr.mxu0 0.0
    %263 = vmatpush1.msra.mxu0 0.0
    %264 = vmatprep.subr.mxu0 0.0
    %265 = vmatpush1.msra.mxu0 0.0
    %266 = vmatprep.subr.mxu0 0.0
    %267 = vmatpush1.msra.mxu0 0.0
    %268 = vmatprep.subr.mxu0 0.0
    %269 = vmatpush1.msra.mxu0 0.0
    %270 = vmatprep.subr.mxu0 0.0
    %271 = vmatpush1.msra.mxu0 0.0
    %272 = vmatprep.subr.mxu0 0.0
    %273 = vmatpush1.msra.mxu0 0.0
    %274 = vmatprep.subr.mxu0 0.0
    %275 = vmatpush1.msra.mxu0 0.0
    %276 = vmatprep.subr.mxu0 0.0
    %277 = vmatpush1.msra.mxu0 0.0
    %278 = vmatprep.subr.mxu0 0.0
    %279 = vmatpush1.msra.mxu0 0.0
    %280 = vmatprep.subr.mxu0 0.0
    %281 = vmatpush1.msra.mxu0 0.0
    %282 = vmatprep.subr.mxu0 0.0
    %283 = vmatpush1.msra.mxu0 0.0
    %284 = vmatprep.subr.mxu0 0.0
    %285 = vmatpush1.msra.mxu0 0.0
    %286 = vmatprep.subr.mxu0 0.0
    %287 = vmatpush1.msra.mxu0 0.0
    %288 = vmatprep.subr.mxu0 0.0
    %289 = vmatpush1.msra.mxu0 0.0
    %290 = vmatprep.subr.mxu0 0.0
    %291 = vmatpush1.msra.mxu0 0.0
    %292 = vmatprep.subr.mxu0 0.0
    %293 = vmatpush1.msra.mxu0 0.0
    %294 = vmatprep.subr.mxu0 0.0
    %295 = vmatpush1.msra.mxu0 0.0
    %296 = vmatprep.subr.mxu0 0.0
    %297 = vmatpush1.msra.mxu0 0.0
    %298 = vmatprep.subr.mxu0 0.0
    %299 = vmatpush1.msra.mxu0 0.0
    %300 = vmatprep.subr.mxu0 0.0
    %301 = vmatpush1.msra.mxu0 0.0
    %302 = vmatprep.subr.mxu0 0.0
    %303 = vmatpush1.msra.mxu0 0.0
    %304 = vmatprep.subr.mxu0 0.0
    %305 = vmatpush1.msra.mxu0 0.0
    %306 = vmatprep.subr.mxu0 0.0
    %307 = vmatpush1.msra.mxu0 0.0
    %308 = vmatprep.mubr.f32.mxu0 0.0
    %309 = vmatmul.mubr.f32.gmra.mrb[0].mxu0 %v239
    %v310 = vpop.f32.mrb[0].mxu0
    %v311 = vadd.f32 0.0, %v310
    %v312 = vpop.f32.mrb[0].mxu0
    %313 = vmatprep.mubr.f32.mxu0 0.0
    %314 = vmatmul.mubr.f32.gmra.mrb[0].mxu0 %v242
    %v315 = vpop.f32.mrb[0].mxu0
    %v316 = vadd.f32 0.0, %v315
    %v317 = vpop.f32.mrb[0].mxu0
    %318 = vdwg.mxu0
    %319 = vrot.lane.b32.xlu0 %v111, 120
    %v320 = vpop.permute.xlu0 %319
    %321 = vrot.lane.b32.xlu0 %v116, 120
    %v322 = vpop.permute.xlu0 %321
    %323 = vrot.lane.b32.xlu0 %v111, 88
    %v324 = vpop.permute.xlu0 %323
    %325 = vrot.lane.b32.xlu0 %v116, 88
    %v326 = vpop.permute.xlu0 %325
    %v327 = vsel %vm125, %v320, 0
    %v329 = vsel %vm125, %v322, 0
    %v331 = vsel %vm125, %v324, 0
    %v333 = vsel %vm125, %v326, 0
    %335 = vmatprep.subr.mxu0 0.0
    %336 = vmatpush1.xpose.msra.mxu0 %v331
    %337 = vmatprep.subr.mxu0 0.0
    %338 = vmatpush1.xpose.msra.mxu0 %v333
    %339 = vmatprep.subr.mxu0 0.0
    %340 = vmatpush1.xpose.msra.mxu0 0.0
    %341 = vmatprep.subr.mxu0 0.0
    %342 = vmatpush1.xpose.msra.mxu0 0.0
    %343 = vmatprep.subr.mxu0 0.0
    %344 = vmatpush1.xpose.msra.mxu0 0.0
    %345 = vmatprep.subr.mxu0 0.0
    %346 = vmatpush1.xpose.msra.mxu0 0.0
    %347 = vmatprep.subr.mxu0 0.0
    %348 = vmatpush1.xpose.msra.mxu0 0.0
    %349 = vmatprep.subr.mxu0 0.0
    %350 = vmatpush1.xpose.msra.mxu0 0.0
    %351 = vmatprep.subr.mxu0 0.0
    %352 = vmatpush1.xpose.msra.mxu0 0.0
    %353 = vmatprep.subr.mxu0 0.0
    %354 = vmatpush1.xpose.msra.mxu0 0.0
    %355 = vmatprep.subr.mxu0 0.0
    %356 = vmatpush1.xpose.msra.mxu0 0.0
    %357 = vmatprep.subr.mxu0 0.0
    %358 = vmatpush1.xpose.msra.mxu0 0.0
    %359 = vmatprep.subr.mxu0 0.0
    %360 = vmatpush1.xpose.msra.mxu0 0.0
    %361 = vmatprep.subr.mxu0 0.0
    %362 = vmatpush1.xpose.msra.mxu0 0.0
    %363 = vmatprep.subr.mxu0 0.0
    %364 = vmatpush1.xpose.msra.mxu0 0.0
    %365 = vmatprep.subr.mxu0 0.0
    %366 = vmatpush1.xpose.msra.mxu0 0.0
    %367 = vmatprep.subr.mxu0 0.0
    %368 = vmatpush1.xpose.msra.mxu0 0.0
    %369 = vmatprep.subr.mxu0 0.0
    %370 = vmatpush1.xpose.msra.mxu0 0.0
    %371 = vmatprep.subr.mxu0 0.0
    %372 = vmatpush1.xpose.msra.mxu0 0.0
    %373 = vmatprep.subr.mxu0 0.0
    %374 = vmatpush1.xpose.msra.mxu0 0.0
    %375 = vmatprep.subr.mxu0 0.0
    %376 = vmatpush1.xpose.msra.mxu0 0.0
    %377 = vmatprep.subr.mxu0 0.0
    %378 = vmatpush1.xpose.msra.mxu0 0.0
    %379 = vmatprep.subr.mxu0 0.0
    %380 = vmatpush1.xpose.msra.mxu0 0.0
    %381 = vmatprep.subr.mxu0 0.0
    %382 = vmatpush1.xpose.msra.mxu0 0.0
    %383 = vmatprep.subr.mxu0 0.0
    %384 = vmatpush1.xpose.msra.mxu0 0.0
    %385 = vmatprep.subr.mxu0 0.0
    %386 = vmatpush1.xpose.msra.mxu0 0.0
    %387 = vmatprep.subr.mxu0 0.0
    %388 = vmatpush1.xpose.msra.mxu0 0.0
    %389 = vmatprep.subr.mxu0 0.0
    %390 = vmatpush1.xpose.msra.mxu0 0.0
    %391 = vmatprep.subr.mxu0 0.0
    %392 = vmatpush1.xpose.msra.mxu0 0.0
    %393 = vmatprep.subr.mxu0 0.0
    %394 = vmatpush1.xpose.msra.mxu0 0.0
    %395 = vmatprep.subr.mxu0 0.0
    %396 = vmatpush1.xpose.msra.mxu0 0.0
    %397 = vmatprep.subr.mxu0 0.0
    %398 = vmatpush1.xpose.msra.mxu0 0.0
    %399 = vmatprep.mubr.f32.mxu0 0.0
    %400 = vmatmul.mubr.f32.gmra.mrb[0].mxu0 %v327
    %v401 = vpop.f32.mrb[0].mxu0
    %v402 = vadd.f32 %v29, %v401
    %v403 = vpop.f32.mrb[0].mxu0
    %404 = vmatprep.mubr.f32.mxu0 0.0
    %405 = vmatmul.mubr.f32.gmra.mrb[0].mxu0 %v329
    %v406 = vpop.f32.mrb[0].mxu0
    %v407 = vadd.f32 %v30, %v406
    %v408 = vpop.f32.mrb[0].mxu0
    %409 = vdwg.mxu0
    %v410 = vsel %vm209, %v402, -inf
    %411 = vmax.xlane.f32.xlu0 %v410
    %v412 = vpop.xlane.xlu0 %411
    %v413 = vsel %vm209, %v407, -inf
    %414 = vmax.xlane.f32.xlu0 %v413
    %v415 = vpop.xlane.xlu0 %414
    %v416 = vsub.f32 %v402, %v412
    %v417 = vsub.f32 %v407, %v415
    %v418 = vmul.f32 %v416, 1.442695
    %v419 = vpow.pop %v418
    %v420 = vmul.f32 %v417, 1.442695
    %v421 = vpow.pop %v420
    %v422 = vsel %vm209, %v419, 0.0
    %423 = vadd.xlane.f32.xlu0 %v422
    %v424 = vpop.xlane.xlu0 %423
    %v425 = vsel %vm209, %v421, 0.0
    %426 = vadd.xlane.f32.xlu0 %v425
    %v427 = vpop.xlane.xlu0 %426
    %v428 = vrcp.pop %v424
    %v429 = vmul.f32 %v419, %v428
    %v430 = vrcp.pop %v427
    %v431 = vmul.f32 %v421, %v430
    %432 = vrot.lane.b32.xlu0 %v111, 56
    %v433 = vpop.permute.xlu0 %432
    %434 = vrot.lane.b32.xlu0 %v116, 56
    %v435 = vpop.permute.xlu0 %434
    %v439 = vsel %vm209, %v429, 0
    %v442 = vsel %vm209, %v431, 0
    %444 = vmatprep.subr.mxu0 0.0
    %445 = vmatpush1.msra.mxu0 %v433
    %446 = vmatprep.subr.mxu0 0.0
    %447 = vmatpush1.msra.mxu0 %v435
    %448 = vmatprep.subr.mxu0 0.0
    %449 = vmatpush1.msra.mxu0 0.0
    %450 = vmatprep.subr.mxu0 0.0
    %451 = vmatpush1.msra.mxu0 0.0
    %452 = vmatprep.subr.mxu0 0.0
    %453 = vmatpush1.msra.mxu0 0.0
    %454 = vmatprep.subr.mxu0 0.0
    %455 = vmatpush1.msra.mxu0 0.0
    %456 = vmatprep.subr.mxu0 0.0
    %457 = vmatpush1.msra.mxu0 0.0
    %458 = vmatprep.subr.mxu0 0.0
    %459 = vmatpush1.msra.mxu0 0.0
    %460 = vmatprep.subr.mxu0 0.0
    %461 = vmatpush1.msra.mxu0 0.0
    %462 = vmatprep.subr.mxu0 0.0
    %463 = vmatpush1.msra.mxu0 0.0
    %464 = vmatprep.subr.mxu0 0.0
    %465 = vmatpush1.msra.mxu0 0.0
    %466 = vmatprep.subr.mxu0 0.0
    %467 = vmatpush1.msra.mxu0 0.0
    %468 = vmatprep.subr.mxu0 0.0
    %469 = vmatpush1.msra.mxu0 0.0
    %470 = vmatprep.subr.mxu0 0.0
    %471 = vmatpush1.msra.mxu0 0.0
    %472 = vmatprep.subr.mxu0 0.0
    %473 = vmatpush1.msra.mxu0 0.0
    %474 = vmatprep.subr.mxu0 0.0
    %475 = vmatpush1.msra.mxu0 0.0
    %476 = vmatprep.subr.mxu0 0.0
    %477 = vmatpush1.msra.mxu0 0.0
    %478 = vmatprep.subr.mxu0 0.0
    %479 = vmatpush1.msra.mxu0 0.0
    %480 = vmatprep.subr.mxu0 0.0
    %481 = vmatpush1.msra.mxu0 0.0
    %482 = vmatprep.subr.mxu0 0.0
    %483 = vmatpush1.msra.mxu0 0.0
    %484 = vmatprep.subr.mxu0 0.0
    %485 = vmatpush1.msra.mxu0 0.0
    %486 = vmatprep.subr.mxu0 0.0
    %487 = vmatpush1.msra.mxu0 0.0
    %488 = vmatprep.subr.mxu0 0.0
    %489 = vmatpush1.msra.mxu0 0.0
    %490 = vmatprep.subr.mxu0 0.0
    %491 = vmatpush1.msra.mxu0 0.0
    %492 = vmatprep.subr.mxu0 0.0
    %493 = vmatpush1.msra.mxu0 0.0
    %494 = vmatprep.subr.mxu0 0.0
    %495 = vmatpush1.msra.mxu0 0.0
    %496 = vmatprep.subr.mxu0 0.0
    %497 = vmatpush1.msra.mxu0 0.0
    %498 = vmatprep.subr.mxu0 0.0
    %499 = vmatpush1.msra.mxu0 0.0
    %500 = vmatprep.subr.mxu0 0.0
    %501 = vmatpush1.msra.mxu0 0.0
    %502 = vmatprep.subr.mxu0 0.0
    %503 = vmatpush1.msra.mxu0 0.0
    %504 = vmatprep.subr.mxu0 0.0
    %505 = vmatpush1.msra.mxu0 0.0
    %506 = vmatprep.subr.mxu0 0.0
    %507 = vmatpush1.msra.mxu0 0.0
    %508 = vmatprep.mubr.f32.mxu0 0.0
    %509 = vmatmul.mubr.f32.gmra.mrb[0].mxu0 %v439
    %v510 = vpop.f32.mrb[0].mxu0
    %v511 = vadd.f32 0.0, %v510
    %v512 = vpop.f32.mrb[0].mxu0
    %513 = vmatprep.mubr.f32.mxu0 0.0
    %514 = vmatmul.mubr.f32.gmra.mrb[0].mxu0 %v442
    %v515 = vpop.f32.mrb[0].mxu0
    %v516 = vadd.f32 0.0, %v515
    %v517 = vpop.f32.mrb[0].mxu0
    %518 = vdwg.mxu0
    %519 = vrot.lane.b32.xlu0 %v111, 112
    %v520 = vpop.permute.xlu0 %519
    %521 = vrot.lane.b32.xlu0 %v116, 112
    %v522 = vpop.permute.xlu0 %521
    %523 = vrot.lane.b32.xlu0 %v111, 80
    %v524 = vpop.permute.xlu0 %523
    %525 = vrot.lane.b32.xlu0 %v116, 80
    %v526 = vpop.permute.xlu0 %525
    %v527 = vsel %vm125, %v520, 0
    %v529 = vsel %vm125, %v522, 0
    %v531 = vsel %vm125, %v524, 0
    %v533 = vsel %vm125, %v526, 0
    %535 = vmatprep.subr.mxu0 0.0
    %536 = vmatpush1.xpose.msra.mxu0 %v531
    %537 = vmatprep.subr.mxu0 0.0
    %538 = vmatpush1.xpose.msra.mxu0 %v533
    %539 = vmatprep.subr.mxu0 0.0
    %540 = vmatpush1.xpose.msra.mxu0 0.0
    %541 = vmatprep.subr.mxu0 0.0
    %542 = vmatpush1.xpose.msra.mxu0 0.0
    %543 = vmatprep.subr.mxu0 0.0
    %544 = vmatpush1.xpose.msra.mxu0 0.0
    %545 = vmatprep.subr.mxu0 0.0
    %546 = vmatpush1.xpose.msra.mxu0 0.0
    %547 = vmatprep.subr.mxu0 0.0
    %548 = vmatpush1.xpose.msra.mxu0 0.0
    %549 = vmatprep.subr.mxu0 0.0
    %550 = vmatpush1.xpose.msra.mxu0 0.0
    %551 = vmatprep.subr.mxu0 0.0
    %552 = vmatpush1.xpose.msra.mxu0 0.0
    %553 = vmatprep.subr.mxu0 0.0
    %554 = vmatpush1.xpose.msra.mxu0 0.0
    %555 = vmatprep.subr.mxu0 0.0
    %556 = vmatpush1.xpose.msra.mxu0 0.0
    %557 = vmatprep.subr.mxu0 0.0
    %558 = vmatpush1.xpose.msra.mxu0 0.0
    %559 = vmatprep.subr.mxu0 0.0
    %560 = vmatpush1.xpose.msra.mxu0 0.0
    %561 = vmatprep.subr.mxu0 0.0
    %562 = vmatpush1.xpose.msra.mxu0 0.0
    %563 = vmatprep.subr.mxu0 0.0
    %564 = vmatpush1.xpose.msra.mxu0 0.0
    %565 = vmatprep.subr.mxu0 0.0
    %566 = vmatpush1.xpose.msra.mxu0 0.0
    %567 = vmatprep.subr.mxu0 0.0
    %568 = vmatpush1.xpose.msra.mxu0 0.0
    %569 = vmatprep.subr.mxu0 0.0
    %570 = vmatpush1.xpose.msra.mxu0 0.0
    %571 = vmatprep.subr.mxu0 0.0
    %572 = vmatpush1.xpose.msra.mxu0 0.0
    %573 = vmatprep.subr.mxu0 0.0
    %574 = vmatpush1.xpose.msra.mxu0 0.0
    %575 = vmatprep.subr.mxu0 0.0
    %576 = vmatpush1.xpose.msra.mxu0 0.0
    %577 = vmatprep.subr.mxu0 0.0
    %578 = vmatpush1.xpose.msra.mxu0 0.0
    %579 = vmatprep.subr.mxu0 0.0
    %580 = vmatpush1.xpose.msra.mxu0 0.0
    %581 = vmatprep.subr.mxu0 0.0
    %582 = vmatpush1.xpose.msra.mxu0 0.0
    %583 = vmatprep.subr.mxu0 0.0
    %584 = vmatpush1.xpose.msra.mxu0 0.0
    %585 = vmatprep.subr.mxu0 0.0
    %586 = vmatpush1.xpose.msra.mxu0 0.0
    %587 = vmatprep.subr.mxu0 0.0
    %588 = vmatpush1.xpose.msra.mxu0 0.0
    %589 = vmatprep.subr.mxu0 0.0
    %590 = vmatpush1.xpose.msra.mxu0 0.0
    %591 = vmatprep.subr.mxu0 0.0
    %592 = vmatpush1.xpose.msra.mxu0 0.0
    %593 = vmatprep.subr.mxu0 0.0
    %594 = vmatpush1.xpose.msra.mxu0 0.0
    %595 = vmatprep.subr.mxu0 0.0
    %596 = vmatpush1.xpose.msra.mxu0 0.0
    %597 = vmatprep.subr.mxu0 0.0
    %598 = vmatpush1.xpose.msra.mxu0 0.0
    %599 = vmatprep.mubr.f32.mxu0 0.0
    %600 = vmatmul.mubr.f32.gmra.mrb[0].mxu0 %v527
    %v601 = vpop.f32.mrb[0].mxu0
    %v602 = vadd.f32 %v29, %v601
    %v603 = vpop.f32.mrb[0].mxu0
    %604 = vmatprep.mubr.f32.mxu0 0.0
    %605 = vmatmul.mubr.f32.gmra.mrb[0].mxu0 %v529
    %v606 = vpop.f32.mrb[0].mxu0
    %v607 = vadd.f32 %v30, %v606
    %v608 = vpop.f32.mrb[0].mxu0
    %609 = vdwg.mxu0
    %v610 = vsel %vm209, %v602, -inf
    %611 = vmax.xlane.f32.xlu0 %v610
    %v612 = vpop.xlane.xlu0 %611
    %v613 = vsel %vm209, %v607, -inf
    %614 = vmax.xlane.f32.xlu0 %v613
    %v615 = vpop.xlane.xlu0 %614
    %v616 = vsub.f32 %v602, %v612
    %v617 = vsub.f32 %v607, %v615
    %v618 = vmul.f32 %v616, 1.442695
    %v619 = vpow.pop %v618
    %v620 = vmul.f32 %v617, 1.442695
    %v621 = vpow.pop %v620
    %v622 = vsel %vm209, %v619, 0.0
    %623 = vadd.xlane.f32.xlu0 %v622
    %v624 = vpop.xlane.xlu0 %623
    %v625 = vsel %vm209, %v621, 0.0
    %626 = vadd.xlane.f32.xlu0 %v625
    %v627 = vpop.xlane.xlu0 %626
    %v628 = vrcp.pop %v624
    %v629 = vmul.f32 %v619, %v628
    %v630 = vrcp.pop %v627
    %v631 = vmul.f32 %v621, %v630
    %632 = vrot.lane.b32.xlu0 %v111, 48
    %v633 = vpop.permute.xlu0 %632
    %634 = vrot.lane.b32.xlu0 %v116, 48
    %v635 = vpop.permute.xlu0 %634
    %v639 = vsel %vm209, %v629, 0
    %v642 = vsel %vm209, %v631, 0
    %644 = vmatprep.subr.mxu0 0.0
    %645 = vmatpush1.msra.mxu0 %v633
    %646 = vmatprep.subr.mxu0 0.0
    %647 = vmatpush1.msra.mxu0 %v635
    %648 = vmatprep.subr.mxu0 0.0
    %649 = vmatpush1.msra.mxu0 0.0
    %650 = vmatprep.subr.mxu0 0.0
    %651 = vmatpush1.msra.mxu0 0.0
    %652 = vmatprep.subr.mxu0 0.0
    %653 = vmatpush1.msra.mxu0 0.0
    %654 = vmatprep.subr.mxu0 0.0
    %655 = vmatpush1.msra.mxu0 0.0
    %656 = vmatprep.subr.mxu0 0.0
    %657 = vmatpush1.msra.mxu0 0.0
    %658 = vmatprep.subr.mxu0 0.0
    %659 = vmatpush1.msra.mxu0 0.0
    %660 = vmatprep.subr.mxu0 0.0
    %661 = vmatpush1.msra.mxu0 0.0
    %662 = vmatprep.subr.mxu0 0.0
    %663 = vmatpush1.msra.mxu0 0.0
    %664 = vmatprep.subr.mxu0 0.0
    %665 = vmatpush1.msra.mxu0 0.0
    %666 = vmatprep.subr.mxu0 0.0
    %667 = vmatpush1.msra.mxu0 0.0
    %668 = vmatprep.subr.mxu0 0.0
    %669 = vmatpush1.msra.mxu0 0.0
    %670 = vmatprep.subr.mxu0 0.0
    %671 = vmatpush1.msra.mxu0 0.0
    %672 = vmatprep.subr.mxu0 0.0
    %673 = vmatpush1.msra.mxu0 0.0
    %674 = vmatprep.subr.mxu0 0.0
    %675 = vmatpush1.msra.mxu0 0.0
    %676 = vmatprep.subr.mxu0 0.0
    %677 = vmatpush1.msra.mxu0 0.0
    %678 = vmatprep.subr.mxu0 0.0
    %679 = vmatpush1.msra.mxu0 0.0
    %680 = vmatprep.subr.mxu0 0.0
    %681 = vmatpush1.msra.mxu0 0.0
    %682 = vmatprep.subr.mxu0 0.0
    %683 = vmatpush1.msra.mxu0 0.0
    %684 = vmatprep.subr.mxu0 0.0
    %685 = vmatpush1.msra.mxu0 0.0
    %686 = vmatprep.subr.mxu0 0.0
    %687 = vmatpush1.msra.mxu0 0.0
    %688 = vmatprep.subr.mxu0 0.0
    %689 = vmatpush1.msra.mxu0 0.0
    %690 = vmatprep.subr.mxu0 0.0
    %691 = vmatpush1.msra.mxu0 0.0
    %692 = vmatprep.subr.mxu0 0.0
    %693 = vmatpush1.msra.mxu0 0.0
    %694 = vmatprep.subr.mxu0 0.0
    %695 = vmatpush1.msra.mxu0 0.0
    %696 = vmatprep.subr.mxu0 0.0
    %697 = vmatpush1.msra.mxu0 0.0
    %698 = vmatprep.subr.mxu0 0.0
    %699 = vmatpush1.msra.mxu0 0.0
    %700 = vmatprep.subr.mxu0 0.0
    %701 = vmatpush1.msra.mxu0 0.0
    %702 = vmatprep.subr.mxu0 0.0
    %703 = vmatpush1.msra.mxu0 0.0
    %704 = vmatprep.subr.mxu0 0.0
    %705 = vmatpush1.msra.mxu0 0.0
    %706 = vmatprep.subr.mxu0 0.0
    %707 = vmatpush1.msra.mxu0 0.0
    %708 = vmatprep.mubr.f32.mxu0 0.0
    %709 = vmatmul.mubr.f32.gmra.mrb[0].mxu0 %v639
    %v710 = vpop.f32.mrb[0].mxu0
    %v711 = vadd.f32 0.0, %v710
    %v712 = vpop.f32.mrb[0].mxu0
    %713 = vmatprep.mubr.f32.mxu0 0.0
    %714 = vmatmul.mubr.f32.gmra.mrb[0].mxu0 %v642
    %v715 = vpop.f32.mrb[0].mxu0
    %v716 = vadd.f32 0.0, %v715
    %v717 = vpop.f32.mrb[0].mxu0
    %718 = vdwg.mxu0
    %719 = vrot.lane.b32.xlu0 %v111, 104
    %v720 = vpop.permute.xlu0 %719
    %721 = vrot.lane.b32.xlu0 %v116, 104
    %v722 = vpop.permute.xlu0 %721
    %723 = vrot.lane.b32.xlu0 %v111, 72
    %v724 = vpop.permute.xlu0 %723
    %725 = vrot.lane.b32.xlu0 %v116, 72
    %v726 = vpop.permute.xlu0 %725
    %v727 = vsel %vm125, %v720, 0
    %v729 = vsel %vm125, %v722, 0
    %v731 = vsel %vm125, %v724, 0
    %v733 = vsel %vm125, %v726, 0
    %735 = vmatprep.subr.mxu0 0.0
    %736 = vmatpush1.xpose.msra.mxu0 %v731
    %737 = vmatprep.subr.mxu0 0.0
    %738 = vmatpush1.xpose.msra.mxu0 %v733
    %739 = vmatprep.subr.mxu0 0.0
    %740 = vmatpush1.xpose.msra.mxu0 0.0
    %741 = vmatprep.subr.mxu0 0.0
    %742 = vmatpush1.xpose.msra.mxu0 0.0
    %743 = vmatprep.subr.mxu0 0.0
    %744 = vmatpush1.xpose.msra.mxu0 0.0
    %745 = vmatprep.subr.mxu0 0.0
    %746 = vmatpush1.xpose.msra.mxu0 0.0
    %747 = vmatprep.subr.mxu0 0.0
    %748 = vmatpush1.xpose.msra.mxu0 0.0
    %749 = vmatprep.subr.mxu0 0.0
    %750 = vmatpush1.xpose.msra.mxu0 0.0
    %751 = vmatprep.subr.mxu0 0.0
    %752 = vmatpush1.xpose.msra.mxu0 0.0
    %753 = vmatprep.subr.mxu0 0.0
    %754 = vmatpush1.xpose.msra.mxu0 0.0
    %755 = vmatprep.subr.mxu0 0.0
    %756 = vmatpush1.xpose.msra.mxu0 0.0
    %757 = vmatprep.subr.mxu0 0.0
    %758 = vmatpush1.xpose.msra.mxu0 0.0
    %759 = vmatprep.subr.mxu0 0.0
    %760 = vmatpush1.xpose.msra.mxu0 0.0
    %761 = vmatprep.subr.mxu0 0.0
    %762 = vmatpush1.xpose.msra.mxu0 0.0
    %763 = vmatprep.subr.mxu0 0.0
    %764 = vmatpush1.xpose.msra.mxu0 0.0
    %765 = vmatprep.subr.mxu0 0.0
    %766 = vmatpush1.xpose.msra.mxu0 0.0
    %767 = vmatprep.subr.mxu0 0.0
    %768 = vmatpush1.xpose.msra.mxu0 0.0
    %769 = vmatprep.subr.mxu0 0.0
    %770 = vmatpush1.xpose.msra.mxu0 0.0
    %771 = vmatprep.subr.mxu0 0.0
    %772 = vmatpush1.xpose.msra.mxu0 0.0
    %773 = vmatprep.subr.mxu0 0.0
    %774 = vmatpush1.xpose.msra.mxu0 0.0
    %775 = vmatprep.subr.mxu0 0.0
    %776 = vmatpush1.xpose.msra.mxu0 0.0
    %777 = vmatprep.subr.mxu0 0.0
    %778 = vmatpush1.xpose.msra.mxu0 0.0
    %779 = vmatprep.subr.mxu0 0.0
    %780 = vmatpush1.xpose.msra.mxu0 0.0
    %781 = vmatprep.subr.mxu0 0.0
    %782 = vmatpush1.xpose.msra.mxu0 0.0
    %783 = vmatprep.subr.mxu0 0.0
    %784 = vmatpush1.xpose.msra.mxu0 0.0
    %785 = vmatprep.subr.mxu0 0.0
    %786 = vmatpush1.xpose.msra.mxu0 0.0
    %787 = vmatprep.subr.mxu0 0.0
    %788 = vmatpush1.xpose.msra.mxu0 0.0
    %789 = vmatprep.subr.mxu0 0.0
    %790 = vmatpush1.xpose.msra.mxu0 0.0
    %791 = vmatprep.subr.mxu0 0.0
    %792 = vmatpush1.xpose.msra.mxu0 0.0
    %793 = vmatprep.subr.mxu0 0.0
    %794 = vmatpush1.xpose.msra.mxu0 0.0
    %795 = vmatprep.subr.mxu0 0.0
    %796 = vmatpush1.xpose.msra.mxu0 0.0
    %797 = vmatprep.subr.mxu0 0.0
    %798 = vmatpush1.xpose.msra.mxu0 0.0
    %799 = vmatprep.mubr.f32.mxu0 0.0
    %800 = vmatmul.mubr.f32.gmra.mrb[0].mxu0 %v727
    %v801 = vpop.f32.mrb[0].mxu0
    %v802 = vadd.f32 %v29, %v801
    %v803 = vpop.f32.mrb[0].mxu0
    %804 = vmatprep.mubr.f32.mxu0 0.0
    %805 = vmatmul.mubr.f32.gmra.mrb[0].mxu0 %v729
    %v806 = vpop.f32.mrb[0].mxu0
    %v807 = vadd.f32 %v30, %v806
    %v808 = vpop.f32.mrb[0].mxu0
    %809 = vdwg.mxu0
    %v810 = vsel %vm209, %v802, -inf
    %811 = vmax.xlane.f32.xlu0 %v810
    %v812 = vpop.xlane.xlu0 %811
    %v813 = vsel %vm209, %v807, -inf
    %814 = vmax.xlane.f32.xlu0 %v813
    %v815 = vpop.xlane.xlu0 %814
    %v816 = vsub.f32 %v802, %v812
    %v817 = vsub.f32 %v807, %v815
    %v818 = vmul.f32 %v816, 1.442695
    %v819 = vpow.pop %v818
    %v820 = vmul.f32 %v817, 1.442695
    %v821 = vpow.pop %v820
    %v822 = vsel %vm209, %v819, 0.0
    %823 = vadd.xlane.f32.xlu0 %v822
    %v824 = vpop.xlane.xlu0 %823
    %v825 = vsel %vm209, %v821, 0.0
    %826 = vadd.xlane.f32.xlu0 %v825
    %v827 = vpop.xlane.xlu0 %826
    %v828 = vrcp.pop %v824
    %v829 = vmul.f32 %v819, %v828
    %v830 = vrcp.pop %v827
    %v831 = vmul.f32 %v821, %v830
    %832 = vrot.lane.b32.xlu0 %v111, 40
    %v833 = vpop.permute.xlu0 %832
    %834 = vrot.lane.b32.xlu0 %v116, 40
    %v835 = vpop.permute.xlu0 %834
    %v839 = vsel %vm209, %v829, 0
    %v842 = vsel %vm209, %v831, 0
    %844 = vmatprep.subr.mxu0 0.0
    %845 = vmatpush1.msra.mxu0 %v833
    %846 = vmatprep.subr.mxu0 0.0
    %847 = vmatpush1.msra.mxu0 %v835
    %848 = vmatprep.subr.mxu0 0.0
    %849 = vmatpush1.msra.mxu0 0.0
    %850 = vmatprep.subr.mxu0 0.0
    %851 = vmatpush1.msra.mxu0 0.0
    %852 = vmatprep.subr.mxu0 0.0
    %853 = vmatpush1.msra.mxu0 0.0
    %854 = vmatprep.subr.mxu0 0.0
    %855 = vmatpush1.msra.mxu0 0.0
    %856 = vmatprep.subr.mxu0 0.0
    %857 = vmatpush1.msra.mxu0 0.0
    %858 = vmatprep.subr.mxu0 0.0
    %859 = vmatpush1.msra.mxu0 0.0
    %860 = vmatprep.subr.mxu0 0.0
    %861 = vmatpush1.msra.mxu0 0.0
    %862 = vmatprep.subr.mxu0 0.0
    %863 = vmatpush1.msra.mxu0 0.0
    %864 = vmatprep.subr.mxu0 0.0
    %865 = vmatpush1.msra.mxu0 0.0
    %866 = vmatprep.subr.mxu0 0.0
    %867 = vmatpush1.msra.mxu0 0.0
    %868 = vmatprep.subr.mxu0 0.0
    %869 = vmatpush1.msra.mxu0 0.0
    %870 = vmatprep.subr.mxu0 0.0
    %871 = vmatpush1.msra.mxu0 0.0
    %872 = vmatprep.subr.mxu0 0.0
    %873 = vmatpush1.msra.mxu0 0.0
    %874 = vmatprep.subr.mxu0 0.0
    %875 = vmatpush1.msra.mxu0 0.0
    %876 = vmatprep.subr.mxu0 0.0
    %877 = vmatpush1.msra.mxu0 0.0
    %878 = vmatprep.subr.mxu0 0.0
    %879 = vmatpush1.msra.mxu0 0.0
    %880 = vmatprep.subr.mxu0 0.0
    %881 = vmatpush1.msra.mxu0 0.0
    %882 = vmatprep.subr.mxu0 0.0
    %883 = vmatpush1.msra.mxu0 0.0
    %884 = vmatprep.subr.mxu0 0.0
    %885 = vmatpush1.msra.mxu0 0.0
    %886 = vmatprep.subr.mxu0 0.0
    %887 = vmatpush1.msra.mxu0 0.0
    %888 = vmatprep.subr.mxu0 0.0
    %889 = vmatpush1.msra.mxu0 0.0
    %890 = vmatprep.subr.mxu0 0.0
    %891 = vmatpush1.msra.mxu0 0.0
    %892 = vmatprep.subr.mxu0 0.0
    %893 = vmatpush1.msra.mxu0 0.0
    %894 = vmatprep.subr.mxu0 0.0
    %895 = vmatpush1.msra.mxu0 0.0
    %896 = vmatprep.subr.mxu0 0.0
    %897 = vmatpush1.msra.mxu0 0.0
    %898 = vmatprep.subr.mxu0 0.0
    %899 = vmatpush1.msra.mxu0 0.0
    %900 = vmatprep.subr.mxu0 0.0
    %901 = vmatpush1.msra.mxu0 0.0
    %902 = vmatprep.subr.mxu0 0.0
    %903 = vmatpush1.msra.mxu0 0.0
    %904 = vmatprep.subr.mxu0 0.0
    %905 = vmatpush1.msra.mxu0 0.0
    %906 = vmatprep.subr.mxu0 0.0
    %907 = vmatpush1.msra.mxu0 0.0
    %908 = vmatprep.mubr.f32.mxu0 0.0
    %909 = vmatmul.mubr.f32.gmra.mrb[0].mxu0 %v839
    %v910 = vpop.f32.mrb[0].mxu0
    %v911 = vadd.f32 0.0, %v910
    %v912 = vpop.f32.mrb[0].mxu0
    %913 = vmatprep.mubr.f32.mxu0 0.0
    %914 = vmatmul.mubr.f32.gmra.mrb[0].mxu0 %v842
    %v915 = vpop.f32.mrb[0].mxu0
    %v916 = vadd.f32 0.0, %v915
    %v917 = vpop.f32.mrb[0].mxu0
    %918 = vdwg.mxu0
    %921 = vrot.lane.b32.xlu0 %v511, 8
    %v922 = vpop.permute.xlu0 %921
    %923 = vrot.lane.b32.xlu0 %v516, 8
    %v924 = vpop.permute.xlu0 %923
    %929 = vrot.lane.b32.xlu0 %v711, 16
    %v930 = vpop.permute.xlu0 %929
    %931 = vrot.lane.b32.xlu0 %v716, 16
    %v932 = vpop.permute.xlu0 %931
    %937 = vrot.lane.b32.xlu0 %v911, 24
    %v938 = vpop.permute.xlu0 %937
    %939 = vrot.lane.b32.xlu0 %v916, 24
    %v940 = vpop.permute.xlu0 %939
    %v943 = vsel %vm125, %v311, %v922
    %v944 = vsel %vm125, %v316, %v924
    %v945 = vsel %vm209, %v943, %v930
    %v946 = vsel %vm209, %v944, %v932
    %vm947 = vcmask 195584
    %v948 = vsel %vm947, %v945, %v938
    %v949 = vsel %vm947, %v946, %v940
    %v950 = vlaneseq
    %v951 = vshrl.u32 %v950, 7
    %v952 = vsub.s32 0, %v951
    %v953 = vrot.slane %v31, %v952
    %958 = vrot.lane.b32.xlu0 %v33, 32
    %v959 = vpop.permute.xlu0 %958
    %960 = vrot.lane.b32.xlu0 %v34, 32
    %v961 = vpop.permute.xlu0 %960
    %962 = vrot.lane.b32.xlu0 %v35, 32
    %v963 = vpop.permute.xlu0 %962
    %964 = vrot.lane.b32.xlu0 %v36, 32
    %v965 = vpop.permute.xlu0 %964
    %v971 = vsel %vm37, %v948, 0
    %v974 = vsel %vm37, %v949, 0
    %976 = vmatprep.subr.mxu0 0.0
    %977 = vmatpush1.msra.mxu0 %v959
    %978 = vmatprep.subr.mxu0 0.0
    %979 = vmatpush1.msra.mxu0 %v961
    %980 = vmatprep.subr.mxu0 0.0
    %981 = vmatpush1.msra.mxu0 %v963
    %982 = vmatprep.subr.mxu0 0.0
    %983 = vmatpush1.msra.mxu0 %v965
    %984 = vmatprep.subr.mxu0 0.0
    %985 = vmatpush1.msra.mxu0 0.0
    %986 = vmatprep.subr.mxu0 0.0
    %987 = vmatpush1.msra.mxu0 0.0
    %988 = vmatprep.subr.mxu0 0.0
    %989 = vmatpush1.msra.mxu0 0.0
    %990 = vmatprep.subr.mxu0 0.0
    %991 = vmatpush1.msra.mxu0 0.0
    %992 = vmatprep.subr.mxu0 0.0
    %993 = vmatpush1.msra.mxu0 0.0
    %994 = vmatprep.subr.mxu0 0.0
    %995 = vmatpush1.msra.mxu0 0.0
    %996 = vmatprep.subr.mxu0 0.0
    %997 = vmatpush1.msra.mxu0 0.0
    %998 = vmatprep.subr.mxu0 0.0
    %999 = vmatpush1.msra.mxu0 0.0
    %1000 = vmatprep.subr.mxu0 0.0
    %1001 = vmatpush1.msra.mxu0 0.0
    %1002 = vmatprep.subr.mxu0 0.0
    %1003 = vmatpush1.msra.mxu0 0.0
    %1004 = vmatprep.subr.mxu0 0.0
    %1005 = vmatpush1.msra.mxu0 0.0
    %1006 = vmatprep.subr.mxu0 0.0
    %1007 = vmatpush1.msra.mxu0 0.0
    %1008 = vmatprep.subr.mxu0 0.0
    %1009 = vmatpush1.msra.mxu0 0.0
    %1010 = vmatprep.subr.mxu0 0.0
    %1011 = vmatpush1.msra.mxu0 0.0
    %1012 = vmatprep.subr.mxu0 0.0
    %1013 = vmatpush1.msra.mxu0 0.0
    %1014 = vmatprep.subr.mxu0 0.0
    %1015 = vmatpush1.msra.mxu0 0.0
    %1016 = vmatprep.subr.mxu0 0.0
    %1017 = vmatpush1.msra.mxu0 0.0
    %1018 = vmatprep.subr.mxu0 0.0
    %1019 = vmatpush1.msra.mxu0 0.0
    %1020 = vmatprep.subr.mxu0 0.0
    %1021 = vmatpush1.msra.mxu0 0.0
    %1022 = vmatprep.subr.mxu0 0.0
    %1023 = vmatpush1.msra.mxu0 0.0
    %1024 = vmatprep.subr.mxu0 0.0
    %1025 = vmatpush1.msra.mxu0 0.0
    %1026 = vmatprep.subr.mxu0 0.0
    %1027 = vmatpush1.msra.mxu0 0.0
    %1028 = vmatprep.subr.mxu0 0.0
    %1029 = vmatpush1.msra.mxu0 0.0
    %1030 = vmatprep.subr.mxu0 0.0
    %1031 = vmatpush1.msra.mxu0 0.0
    %1032 = vmatprep.subr.mxu0 0.0
    %1033 = vmatpush1.msra.mxu0 0.0
    %1034 = vmatprep.subr.mxu0 0.0
    %1035 = vmatpush1.msra.mxu0 0.0
    %1036 = vmatprep.subr.mxu0 0.0
    %1037 = vmatpush1.msra.mxu0 0.0
    %1038 = vmatprep.subr.mxu0 0.0
    %1039 = vmatpush1.msra.mxu0 0.0
    %1040 = vmatprep.mubr.f32.mxu0 0.0
    %1041 = vmatmul.mubr.f32.gmra.mrb[0].mxu0 %v971
    %v1042 = vpop.f32.mrb[0].mxu0
    %v1043 = vadd.f32 %v953, %v1042
    %v1044 = vpop.f32.mrb[0].mxu0
    %1045 = vmatprep.mubr.f32.mxu0 0.0
    %1046 = vmatmul.mubr.f32.gmra.mrb[0].mxu0 %v974
    %v1047 = vpop.f32.mrb[0].mxu0
    %v1048 = vadd.f32 %v953, %v1047
    %v1049 = vpop.f32.mrb[0].mxu0
    %1050 = vdwg.mxu0
    %v1051 = vadd.f32 %v1043, %v27
    %v1052 = vadd.f32 %v1048, %v28
    %v1053 = vsel %vm37, %v1051, 0.0
    %1054 = vadd.xlane.f32.xlu0 %v1053
    %v1055 = vpop.xlane.xlu0 %1054
    %v1056 = vsel %vm37, %v1052, 0.0
    %1057 = vadd.xlane.f32.xlu0 %v1056
    %v1058 = vpop.xlane.xlu0 %1057
    %v1059 = vrcp.pop 32.0
    %v1060 = vmul.f32 %v1055, %v1059
    %v1061 = vmul.f32 %v1058, %v1059
    %v1062 = vsub.f32 %v1051, %v1060
    %v1063 = vsub.f32 %v1052, %v1061
    %v1064 = vmul.f32 %v1062, %v1062
    %v1065 = vmul.f32 %v1063, %v1063
    %v1066 = vsel %vm37, %v1064, 0.0
    %1067 = vadd.xlane.f32.xlu0 %v1066
    %v1068 = vpop.xlane.xlu0 %1067
    %v1069 = vsel %vm37, %v1065, 0.0
    %1070 = vadd.xlane.f32.xlu0 %v1069
    %v1071 = vpop.xlane.xlu0 %1070
    %v1072 = vmul.f32 %v1068, %v1059
    %v1073 = vmul.f32 %v1071, %v1059
    %v1074 = vadd.f32 %v1072, 1e-05
    %v1075 = vadd.f32 %v1073, 1e-05
    %v1076 = vrsqrt.pop %v1074
    %v1077 = vrsqrt.pop %v1075
    %v1078 = vmul.f32 %v1062, %v1076
    %v1079 = vmul.f32 %v1063, %v1077
    %v1080 = vlaneseq
    %v1081 = vshrl.u32 %v1080, 7
    %v1082 = vsub.s32 1, %v1081
    %v1083 = vrot.slane %v31, %v1082
    %v1084 = vmul.f32 %v1078, %v1083
    %v1085 = vmul.f32 %v1079, %v1083
    %v1086 = vlaneseq
    %v1087 = vshrl.u32 %v1086, 7
    %v1088 = vsub.s32 2, %v1087
    %v1089 = vrot.slane %v31, %v1088
    %v1090 = vadd.f32 %v1084, %v1089
    %v1091 = vadd.f32 %v1085, %v1089
    %v1092 = vld [vmem:[%s4] sm:$0xff]
    %v1093 = vld [vmem:[%s4 + $0x8] sm:$0xff]
    %v1094 = vld [vmem:[%s4 + $0x10] sm:$0xff]
    %v1095 = vld [vmem:[%s4 + $0x18] sm:$0xff]
    %v1096 = vld [vmem:[%s4 + $0x20] sm:$0xff]
    %v1097 = vld [vmem:[%s4 + $0x28] sm:$0xff]
    %v1098 = vld [vmem:[%s4 + $0x30] sm:$0xff]
    %v1099 = vld [vmem:[%s4 + $0x38] sm:$0xff]
    %v1101 = vsel %vm37, %v1090, 0
    %v1104 = vsel %vm37, %v1091, 0
    %1106 = vmatprep.subr.mxu0 0.0
    %1107 = vmatpush1.msra.mxu0 %v1093
    %1108 = vmatprep.subr.mxu0 0.0
    %1109 = vmatpush1.msra.mxu0 %v1095
    %1110 = vmatprep.subr.mxu0 0.0
    %1111 = vmatpush1.msra.mxu0 %v1097
    %1112 = vmatprep.subr.mxu0 0.0
    %1113 = vmatpush1.msra.mxu0 %v1099
    %1114 = vmatprep.subr.mxu0 0.0
    %1115 = vmatpush1.msra.mxu0 0.0
    %1116 = vmatprep.subr.mxu0 0.0
    %1117 = vmatpush1.msra.mxu0 0.0
    %1118 = vmatprep.subr.mxu0 0.0
    %1119 = vmatpush1.msra.mxu0 0.0
    %1120 = vmatprep.subr.mxu0 0.0
    %1121 = vmatpush1.msra.mxu0 0.0
    %1122 = vmatprep.subr.mxu0 0.0
    %1123 = vmatpush1.msra.mxu0 0.0
    %1124 = vmatprep.subr.mxu0 0.0
    %1125 = vmatpush1.msra.mxu0 0.0
    %1126 = vmatprep.subr.mxu0 0.0
    %1127 = vmatpush1.msra.mxu0 0.0
    %1128 = vmatprep.subr.mxu0 0.0
    %1129 = vmatpush1.msra.mxu0 0.0
    %1130 = vmatprep.subr.mxu0 0.0
    %1131 = vmatpush1.msra.mxu0 0.0
    %1132 = vmatprep.subr.mxu0 0.0
    %1133 = vmatpush1.msra.mxu0 0.0
    %1134 = vmatprep.subr.mxu0 0.0
    %1135 = vmatpush1.msra.mxu0 0.0
    %1136 = vmatprep.subr.mxu0 0.0
    %1137 = vmatpush1.msra.mxu0 0.0
    %1138 = vmatprep.subr.mxu0 0.0
    %1139 = vmatpush1.msra.mxu0 0.0
    %1140 = vmatprep.subr.mxu0 0.0
    %1141 = vmatpush1.msra.mxu0 0.0
    %1142 = vmatprep.subr.mxu0 0.0
    %1143 = vmatpush1.msra.mxu0 0.0
    %1144 = vmatprep.subr.mxu0 0.0
    %1145 = vmatpush1.msra.mxu0 0.0
    %1146 = vmatprep.subr.mxu0 0.0
    %1147 = vmatpush1.msra.mxu0 0.0
    %1148 = vmatprep.subr.mxu0 0.0
    %1149 = vmatpush1.msra.mxu0 0.0
    %1150 = vmatprep.subr.mxu0 0.0
    %1151 = vmatpush1.msra.mxu0 0.0
    %1152 = vmatprep.subr.mxu0 0.0
    %1153 = vmatpush1.msra.mxu0 0.0
    %1154 = vmatprep.subr.mxu0 0.0
    %1155 = vmatpush1.msra.mxu0 0.0
    %1156 = vmatprep.subr.mxu0 0.0
    %1157 = vmatpush1.msra.mxu0 0.0
    %1158 = vmatprep.subr.mxu0 0.0
    %1159 = vmatpush1.msra.mxu0 0.0
    %1160 = vmatprep.subr.mxu0 0.0
    %1161 = vmatpush1.msra.mxu0 0.0
    %1162 = vmatprep.subr.mxu0 0.0
    %1163 = vmatpush1.msra.mxu0 0.0
    %1164 = vmatprep.subr.mxu0 0.0
    %1165 = vmatpush1.msra.mxu0 0.0
    %1166 = vmatprep.subr.mxu0 0.0
    %1167 = vmatpush1.msra.mxu0 0.0
    %1168 = vmatprep.subr.mxu0 0.0
    %1169 = vmatpush1.msra.mxu0 0.0
    %1170 = vmatprep.mubr.f32.mxu0 0.0
    %1171 = vmatmul.mubr.f32.gmra.mrb[0].mxu0 %v1101
    %v1172 = vpop.f32.mrb[0].mxu0
    %v1173 = vadd.f32 0.0, %v1172
    %v1174 = vpop.f32.mrb[0].mxu0
    %1175 = vmatprep.mubr.f32.mxu0 0.0
    %1176 = vmatmul.mubr.f32.gmra.mrb[0].mxu0 %v1104
    %v1177 = vpop.f32.mrb[0].mxu0
    %v1178 = vadd.f32 0.0, %v1177
    %v1179 = vpop.f32.mrb[0].mxu0
    %1180 = vdwg.mxu0
    %v1181 = vld [vmem:[%s3] sm:$0xff]
    %v1182 = vld [vmem:[%s3 + $0x8] sm:$0xff]
    %v1183 = vld [vmem:[%s3 + $0x10] sm:$0xff]
    %v1184 = vld [vmem:[%s3 + $0x18] sm:$0xff]
    %v1185 = vld [vmem:[%s3 + $0x20] sm:$0xff]
    %v1186 = vld [vmem:[%s3 + $0x28] sm:$0xff]
    %v1187 = vld [vmem:[%s3 + $0x30] sm:$0xff]
    %v1188 = vld [vmem:[%s3 + $0x38] sm:$0xff]
    %1189 = vrot.lane.b32.xlu0 %v27, 96
    %v1190 = vpop.permute.xlu0 %1189
    %1191 = vrot.lane.b32.xlu0 %v28, 96
    %v1192 = vpop.permute.xlu0 %1191
    %vm1193 = vcmask 523264
    %v1194 = vsel %vm1193, %v1190, 0
    %v1196 = vsel %vm1193, %v1192, 0
    %1198 = vmatprep.subr.mxu0 0.0
    %1199 = vmatpush1.msra.mxu0 %v1181
    %1200 = vmatprep.subr.mxu0 0.0
    %1201 = vmatpush1.msra.mxu0 %v1182
    %1202 = vmatprep.subr.mxu0 0.0
    %1203 = vmatpush1.msra.mxu0 %v1183
    %1204 = vmatprep.subr.mxu0 0.0
    %1205 = vmatpush1.msra.mxu0 %v1184
    %1206 = vmatprep.subr.mxu0 0.0
    %1207 = vmatpush1.msra.mxu0 %v1185
    %1208 = vmatprep.subr.mxu0 0.0
    %1209 = vmatpush1.msra.mxu0 %v1186
    %1210 = vmatprep.subr.mxu0 0.0
    %1211 = vmatpush1.msra.mxu0 %v1187
    %1212 = vmatprep.subr.mxu0 0.0
    %1213 = vmatpush1.msra.mxu0 %v1188
    %1214 = vmatprep.subr.mxu0 0.0
    %1215 = vmatpush1.msra.mxu0 0.0
    %1216 = vmatprep.subr.mxu0 0.0
    %1217 = vmatpush1.msra.mxu0 0.0
    %1218 = vmatprep.subr.mxu0 0.0
    %1219 = vmatpush1.msra.mxu0 0.0
    %1220 = vmatprep.subr.mxu0 0.0
    %1221 = vmatpush1.msra.mxu0 0.0
    %1222 = vmatprep.subr.mxu0 0.0
    %1223 = vmatpush1.msra.mxu0 0.0
    %1224 = vmatprep.subr.mxu0 0.0
    %1225 = vmatpush1.msra.mxu0 0.0
    %1226 = vmatprep.subr.mxu0 0.0
    %1227 = vmatpush1.msra.mxu0 0.0
    %1228 = vmatprep.subr.mxu0 0.0
    %1229 = vmatpush1.msra.mxu0 0.0
    %1230 = vmatprep.subr.mxu0 0.0
    %1231 = vmatpush1.msra.mxu0 0.0
    %1232 = vmatprep.subr.mxu0 0.0
    %1233 = vmatpush1.msra.mxu0 0.0
    %1234 = vmatprep.subr.mxu0 0.0
    %1235 = vmatpush1.msra.mxu0 0.0
    %1236 = vmatprep.subr.mxu0 0.0
    %1237 = vmatpush1.msra.mxu0 0.0
    %1238 = vmatprep.subr.mxu0 0.0
    %1239 = vmatpush1.msra.mxu0 0.0
    %1240 = vmatprep.subr.mxu0 0.0
    %1241 = vmatpush1.msra.mxu0 0.0
    %1242 = vmatprep.subr.mxu0 0.0
    %1243 = vmatpush1.msra.mxu0 0.0
    %1244 = vmatprep.subr.mxu0 0.0
    %1245 = vmatpush1.msra.mxu0 0.0
    %1246 = vmatprep.subr.mxu0 0.0
    %1247 = vmatpush1.msra.mxu0 0.0
    %1248 = vmatprep.subr.mxu0 0.0
    %1249 = vmatpush1.msra.mxu0 0.0
    %1250 = vmatprep.subr.mxu0 0.0
    %1251 = vmatpush1.msra.mxu0 0.0
    %1252 = vmatprep.subr.mxu0 0.0
    %1253 = vmatpush1.msra.mxu0 0.0
    %1254 = vmatprep.subr.mxu0 0.0
    %1255 = vmatpush1.msra.mxu0 0.0
    %1256 = vmatprep.subr.mxu0 0.0
    %1257 = vmatpush1.msra.mxu0 0.0
    %1258 = vmatprep.subr.mxu0 0.0
    %1259 = vmatpush1.msra.mxu0 0.0
    %1260 = vmatprep.subr.mxu0 0.0
    %1261 = vmatpush1.msra.mxu0 0.0
    %1262 = vmatprep.mubr.f32.mxu0 0.0
    %1263 = vmatmul.mubr.f32.gmra.mrb[0].mxu0 %v1194
    %v1264 = vpop.f32.mrb[0].mxu0
    %v1265 = vadd.f32 0.0, %v1264
    %v1266 = vpop.f32.mrb[0].mxu0
    %1267 = vmatprep.mubr.f32.mxu0 0.0
    %1268 = vmatmul.mubr.f32.gmra.mrb[0].mxu0 %v1196
    %v1269 = vpop.f32.mrb[0].mxu0
    %v1270 = vadd.f32 0.0, %v1269
    %v1271 = vpop.f32.mrb[0].mxu0
    %1272 = vdwg.mxu0
    %1275 = vrot.lane.b32.xlu0 %v29, 112
    %v1276 = vpop.permute.xlu0 %1275
    %1277 = vrot.lane.b32.xlu0 %v30, 112
    %v1278 = vpop.permute.xlu0 %1277
    %v1282 = vsel %vm125, %v1173, 0
    %v1285 = vsel %vm125, %v1178, 0
    %v1288 = vsel %vm125, %v1265, 0
    %v1291 = vsel %vm125, %v1270, 0
    %1293 = vmatprep.subr.mxu0 0.0
    %1294 = vmatpush1.xpose.msra.mxu0 %v1288
    %1295 = vmatprep.subr.mxu0 0.0
    %1296 = vmatpush1.xpose.msra.mxu0 %v1291
    %1297 = vmatprep.subr.mxu0 0.0
    %1298 = vmatpush1.xpose.msra.mxu0 0.0
    %1299 = vmatprep.subr.mxu0 0.0
    %1300 = vmatpush1.xpose.msra.mxu0 0.0
    %1301 = vmatprep.subr.mxu0 0.0
    %1302 = vmatpush1.xpose.msra.mxu0 0.0
    %1303 = vmatprep.subr.mxu0 0.0
    %1304 = vmatpush1.xpose.msra.mxu0 0.0
    %1305 = vmatprep.subr.mxu0 0.0
    %1306 = vmatpush1.xpose.msra.mxu0 0.0
    %1307 = vmatprep.subr.mxu0 0.0
    %1308 = vmatpush1.xpose.msra.mxu0 0.0
    %1309 = vmatprep.subr.mxu0 0.0
    %1310 = vmatpush1.xpose.msra.mxu0 0.0
    %1311 = vmatprep.subr.mxu0 0.0
    %1312 = vmatpush1.xpose.msra.mxu0 0.0
    %1313 = vmatprep.subr.mxu0 0.0
    %1314 = vmatpush1.xpose.msra.mxu0 0.0
    %1315 = vmatprep.subr.mxu0 0.0
    %1316 = vmatpush1.xpose.msra.mxu0 0.0
    %1317 = vmatprep.subr.mxu0 0.0
    %1318 = vmatpush1.xpose.msra.mxu0 0.0
    %1319 = vmatprep.subr.mxu0 0.0
    %1320 = vmatpush1.xpose.msra.mxu0 0.0
    %1321 = vmatprep.subr.mxu0 0.0
    %1322 = vmatpush1.xpose.msra.mxu0 0.0
    %1323 = vmatprep.subr.mxu0 0.0
    %1324 = vmatpush1.xpose.msra.mxu0 0.0
    %1325 = vmatprep.subr.mxu0 0.0
    %1326 = vmatpush1.xpose.msra.mxu0 0.0
    %1327 = vmatprep.subr.mxu0 0.0
    %1328 = vmatpush1.xpose.msra.mxu0 0.0
    %1329 = vmatprep.subr.mxu0 0.0
    %1330 = vmatpush1.xpose.msra.mxu0 0.0
    %1331 = vmatprep.subr.mxu0 0.0
    %1332 = vmatpush1.xpose.msra.mxu0 0.0
    %1333 = vmatprep.subr.mxu0 0.0
    %1334 = vmatpush1.xpose.msra.mxu0 0.0
    %1335 = vmatprep.subr.mxu0 0.0
    %1336 = vmatpush1.xpose.msra.mxu0 0.0
    %1337 = vmatprep.subr.mxu0 0.0
    %1338 = vmatpush1.xpose.msra.mxu0 0.0
    %1339 = vmatprep.subr.mxu0 0.0
    %1340 = vmatpush1.xpose.msra.mxu0 0.0
    %1341 = vmatprep.subr.mxu0 0.0
    %1342 = vmatpush1.xpose.msra.mxu0 0.0
    %1343 = vmatprep.subr.mxu0 0.0
    %1344 = vmatpush1.xpose.msra.mxu0 0.0
    %1345 = vmatprep.subr.mxu0 0.0
    %1346 = vmatpush1.xpose.msra.mxu0 0.0
    %1347 = vmatprep.subr.mxu0 0.0
    %1348 = vmatpush1.xpose.msra.mxu0 0.0
    %1349 = vmatprep.subr.mxu0 0.0
    %1350 = vmatpush1.xpose.msra.mxu0 0.0
    %1351 = vmatprep.subr.mxu0 0.0
    %1352 = vmatpush1.xpose.msra.mxu0 0.0
    %1353 = vmatprep.subr.mxu0 0.0
    %1354 = vmatpush1.xpose.msra.mxu0 0.0
    %1355 = vmatprep.subr.mxu0 0.0
    %1356 = vmatpush1.xpose.msra.mxu0 0.0
    %1357 = vmatprep.mubr.f32.mxu0 0.0
    %1358 = vmatmul.mubr.f32.gmra.mrb[0].mxu0 %v1282
    %v1359 = vpop.f32.mrb[0].mxu0
    %v1360 = vadd.f32 %v1276, %v1359
    %v1361 = vpop.f32.mrb[0].mxu0
    %1362 = vmatprep.mubr.f32.mxu0 0.0
    %1363 = vmatmul.mubr.f32.gmra.mrb[0].mxu0 %v1285
    %v1364 = vpop.f32.mrb[0].mxu0
    %v1365 = vadd.f32 %v1278, %v1364
    %v1366 = vpop.f32.mrb[0].mxu0
    %1367 = vdwg.mxu0
    %v1368 = vsel %vm209, %v1360, -inf
    %1369 = vmax.xlane.f32.xlu0 %v1368
    %v1370 = vpop.xlane.xlu0 %1369
    %v1371 = vsel %vm209, %v1365, -inf
    %1372 = vmax.xlane.f32.xlu0 %v1371
    %v1373 = vpop.xlane.xlu0 %1372
    %v1374 = vsub.f32 %v1360, %v1370
    %v1375 = vsub.f32 %v1365, %v1373
    %v1376 = vmul.f32 %v1374, 1.442695
    %v1377 = vpow.pop %v1376
    %v1378 = vmul.f32 %v1375, 1.442695
    %v1379 = vpow.pop %v1378
    %v1380 = vsel %vm209, %v1377, 0.0
    %1381 = vadd.xlane.f32.xlu0 %v1380
    %v1382 = vpop.xlane.xlu0 %1381
    %v1383 = vsel %vm209, %v1379, 0.0
    %1384 = vadd.xlane.f32.xlu0 %v1383
    %v1385 = vpop.xlane.xlu0 %1384
    %v1386 = vrcp.pop %v1382
    %v1387 = vmul.f32 %v1377, %v1386
    %v1388 = vrcp.pop %v1385
    %v1389 = vmul.f32 %v1379, %v1388
    %1390 = vrot.lane.b32.xlu0 %v1265, 96
    %v1391 = vpop.permute.xlu0 %1390
    %1392 = vrot.lane.b32.xlu0 %v1270, 96
    %v1393 = vpop.permute.xlu0 %1392
    %v1397 = vsel %vm209, %v1387, 0
    %v1400 = vsel %vm209, %v1389, 0
    %1402 = vmatprep.subr.mxu0 0.0
    %1403 = vmatpush1.msra.mxu0 %v1391
    %1404 = vmatprep.subr.mxu0 0.0
    %1405 = vmatpush1.msra.mxu0 %v1393
    %1406 = vmatprep.subr.mxu0 0.0
    %1407 = vmatpush1.msra.mxu0 0.0
    %1408 = vmatprep.subr.mxu0 0.0
    %1409 = vmatpush1.msra.mxu0 0.0
    %1410 = vmatprep.subr.mxu0 0.0
    %1411 = vmatpush1.msra.mxu0 0.0
    %1412 = vmatprep.subr.mxu0 0.0
    %1413 = vmatpush1.msra.mxu0 0.0
    %1414 = vmatprep.subr.mxu0 0.0
    %1415 = vmatpush1.msra.mxu0 0.0
    %1416 = vmatprep.subr.mxu0 0.0
    %1417 = vmatpush1.msra.mxu0 0.0
    %1418 = vmatprep.subr.mxu0 0.0
    %1419 = vmatpush1.msra.mxu0 0.0
    %1420 = vmatprep.subr.mxu0 0.0
    %1421 = vmatpush1.msra.mxu0 0.0
    %1422 = vmatprep.subr.mxu0 0.0
    %1423 = vmatpush1.msra.mxu0 0.0
    %1424 = vmatprep.subr.mxu0 0.0
    %1425 = vmatpush1.msra.mxu0 0.0
    %1426 = vmatprep.subr.mxu0 0.0
    %1427 = vmatpush1.msra.mxu0 0.0
    %1428 = vmatprep.subr.mxu0 0.0
    %1429 = vmatpush1.msra.mxu0 0.0
    %1430 = vmatprep.subr.mxu0 0.0
    %1431 = vmatpush1.msra.mxu0 0.0
    %1432 = vmatprep.subr.mxu0 0.0
    %1433 = vmatpush1.msra.mxu0 0.0
    %1434 = vmatprep.subr.mxu0 0.0
    %1435 = vmatpush1.msra.mxu0 0.0
    %1436 = vmatprep.subr.mxu0 0.0
    %1437 = vmatpush1.msra.mxu0 0.0
    %1438 = vmatprep.subr.mxu0 0.0
    %1439 = vmatpush1.msra.mxu0 0.0
    %1440 = vmatprep.subr.mxu0 0.0
    %1441 = vmatpush1.msra.mxu0 0.0
    %1442 = vmatprep.subr.mxu0 0.0
    %1443 = vmatpush1.msra.mxu0 0.0
    %1444 = vmatprep.subr.mxu0 0.0
    %1445 = vmatpush1.msra.mxu0 0.0
    %1446 = vmatprep.subr.mxu0 0.0
    %1447 = vmatpush1.msra.mxu0 0.0
    %1448 = vmatprep.subr.mxu0 0.0
    %1449 = vmatpush1.msra.mxu0 0.0
    %1450 = vmatprep.subr.mxu0 0.0
    %1451 = vmatpush1.msra.mxu0 0.0
    %1452 = vmatprep.subr.mxu0 0.0
    %1453 = vmatpush1.msra.mxu0 0.0
    %1454 = vmatprep.subr.mxu0 0.0
    %1455 = vmatpush1.msra.mxu0 0.0
    %1456 = vmatprep.subr.mxu0 0.0
    %1457 = vmatpush1.msra.mxu0 0.0
    %1458 = vmatprep.subr.mxu0 0.0
    %1459 = vmatpush1.msra.mxu0 0.0
    %1460 = vmatprep.subr.mxu0 0.0
    %1461 = vmatpush1.msra.mxu0 0.0
    %1462 = vmatprep.subr.mxu0 0.0
    %1463 = vmatpush1.msra.mxu0 0.0
    %1464 = vmatprep.subr.mxu0 0.0
    %1465 = vmatpush1.msra.mxu0 0.0
    %1466 = vmatprep.mubr.f32.mxu0 0.0
    %1467 = vmatmul.mubr.f32.gmra.mrb[0].mxu0 %v1397
    %v1468 = vpop.f32.mrb[0].mxu0
    %v1469 = vadd.f32 0.0, %v1468
    %v1470 = vpop.f32.mrb[0].mxu0
    %1471 = vmatprep.mubr.f32.mxu0 0.0
    %1472 = vmatmul.mubr.f32.gmra.mrb[0].mxu0 %v1400
    %v1473 = vpop.f32.mrb[0].mxu0
    %v1474 = vadd.f32 0.0, %v1473
    %v1475 = vpop.f32.mrb[0].mxu0
    %1476 = vdwg.mxu0
    %1477 = vrot.lane.b32.xlu0 %v1173, 120
    %v1478 = vpop.permute.xlu0 %1477
    %1479 = vrot.lane.b32.xlu0 %v1178, 120
    %v1480 = vpop.permute.xlu0 %1479
    %1481 = vrot.lane.b32.xlu0 %v1265, 120
    %v1482 = vpop.permute.xlu0 %1481
    %1483 = vrot.lane.b32.xlu0 %v1270, 120
    %v1484 = vpop.permute.xlu0 %1483
    %v1485 = vsel %vm125, %v1478, 0
    %v1487 = vsel %vm125, %v1480, 0
    %v1489 = vsel %vm125, %v1482, 0
    %v1491 = vsel %vm125, %v1484, 0
    %1493 = vmatprep.subr.mxu0 0.0
    %1494 = vmatpush1.xpose.msra.mxu0 %v1489
    %1495 = vmatprep.subr.mxu0 0.0
    %1496 = vmatpush1.xpose.msra.mxu0 %v1491
    %1497 = vmatprep.subr.mxu0 0.0
    %1498 = vmatpush1.xpose.msra.mxu0 0.0
    %1499 = vmatprep.subr.mxu0 0.0
    %1500 = vmatpush1.xpose.msra.mxu0 0.0
    %1501 = vmatprep.subr.mxu0 0.0
    %1502 = vmatpush1.xpose.msra.mxu0 0.0
    %1503 = vmatprep.subr.mxu0 0.0
    %1504 = vmatpush1.xpose.msra.mxu0 0.0
    %1505 = vmatprep.subr.mxu0 0.0
    %1506 = vmatpush1.xpose.msra.mxu0 0.0
    %1507 = vmatprep.subr.mxu0 0.0
    %1508 = vmatpush1.xpose.msra.mxu0 0.0
    %1509 = vmatprep.subr.mxu0 0.0
    %1510 = vmatpush1.xpose.msra.mxu0 0.0
    %1511 = vmatprep.subr.mxu0 0.0
    %1512 = vmatpush1.xpose.msra.mxu0 0.0
    %1513 = vmatprep.subr.mxu0 0.0
    %1514 = vmatpush1.xpose.msra.mxu0 0.0
    %1515 = vmatprep.subr.mxu0 0.0
    %1516 = vmatpush1.xpose.msra.mxu0 0.0
    %1517 = vmatprep.subr.mxu0 0.0
    %1518 = vmatpush1.xpose.msra.mxu0 0.0
    %1519 = vmatprep.subr.mxu0 0.0
    %1520 = vmatpush1.xpose.msra.mxu0 0.0
    %1521 = vmatprep.subr.mxu0 0.0
    %1522 = vmatpush1.xpose.msra.mxu0 0.0
    %1523 = vmatprep.subr.mxu0 0.0
    %1524 = vmatpush1.xpose.msra.mxu0 0.0
    %1525 = vmatprep.subr.mxu0 0.0
    %1526 = vmatpush1.xpose.msra.mxu0 0.0
    %1527 = vmatprep.subr.mxu0 0.0
    %1528 = vmatpush1.xpose.msra.mxu0 0.0
    %1529 = vmatprep.subr.mxu0 0.0
    %1530 = vmatpush1.xpose.msra.mxu0 0.0
    %1531 = vmatprep.subr.mxu0 0.0
    %1532 = vmatpush1.xpose.msra.mxu0 0.0
    %1533 = vmatprep.subr.mxu0 0.0
    %1534 = vmatpush1.xpose.msra.mxu0 0.0
    %1535 = vmatprep.subr.mxu0 0.0
    %1536 = vmatpush1.xpose.msra.mxu0 0.0
    %1537 = vmatprep.subr.mxu0 0.0
    %1538 = vmatpush1.xpose.msra.mxu0 0.0
    %1539 = vmatprep.subr.mxu0 0.0
    %1540 = vmatpush1.xpose.msra.mxu0 0.0
    %1541 = vmatprep.subr.mxu0 0.0
    %1542 = vmatpush1.xpose.msra.mxu0 0.0
    %1543 = vmatprep.subr.mxu0 0.0
    %1544 = vmatpush1.xpose.msra.mxu0 0.0
    %1545 = vmatprep.subr.mxu0 0.0
    %1546 = vmatpush1.xpose.msra.mxu0 0.0
    %1547 = vmatprep.subr.mxu0 0.0
    %1548 = vmatpush1.xpose.msra.mxu0 0.0
    %1549 = vmatprep.subr.mxu0 0.0
    %1550 = vmatpush1.xpose.msra.mxu0 0.0
    %1551 = vmatprep.subr.mxu0 0.0
    %1552 = vmatpush1.xpose.msra.mxu0 0.0
    %1553 = vmatprep.subr.mxu0 0.0
    %1554 = vmatpush1.xpose.msra.mxu0 0.0
    %1555 = vmatprep.subr.mxu0 0.0
    %1556 = vmatpush1.xpose.msra.mxu0 0.0
    %1557 = vmatprep.mubr.f32.mxu0 0.0
    %1558 = vmatmul.mubr.f32.gmra.mrb[0].mxu0 %v1485
    %v1559 = vpop.f32.mrb[0].mxu0
    %v1560 = vadd.f32 %v1276, %v1559
    %v1561 = vpop.f32.mrb[0].mxu0
    %1562 = vmatprep.mubr.f32.mxu0 0.0
    %1563 = vmatmul.mubr.f32.gmra.mrb[0].mxu0 %v1487
    %v1564 = vpop.f32.mrb[0].mxu0
    %v1565 = vadd.f32 %v1278, %v1564
    %v1566 = vpop.f32.mrb[0].mxu0
    %1567 = vdwg.mxu0
    %v1568 = vsel %vm209, %v1560, -inf
    %1569 = vmax.xlane.f32.xlu0 %v1568
    %v1570 = vpop.xlane.xlu0 %1569
    %v1571 = vsel %vm209, %v1565, -inf
    %1572 = vmax.xlane.f32.xlu0 %v1571
    %v1573 = vpop.xlane.xlu0 %1572
    %v1574 = vsub.f32 %v1560, %v1570
    %v1575 = vsub.f32 %v1565, %v1573
    %v1576 = vmul.f32 %v1574, 1.442695
    %v1577 = vpow.pop %v1576
    %v1578 = vmul.f32 %v1575, 1.442695
    %v1579 = vpow.pop %v1578
    %v1580 = vsel %vm209, %v1577, 0.0
    %1581 = vadd.xlane.f32.xlu0 %v1580
    %v1582 = vpop.xlane.xlu0 %1581
    %v1583 = vsel %vm209, %v1579, 0.0
    %1584 = vadd.xlane.f32.xlu0 %v1583
    %v1585 = vpop.xlane.xlu0 %1584
    %v1586 = vrcp.pop %v1582
    %v1587 = vmul.f32 %v1577, %v1586
    %v1588 = vrcp.pop %v1585
    %v1589 = vmul.f32 %v1579, %v1588
    %1590 = vrot.lane.b32.xlu0 %v1265, 88
    %v1591 = vpop.permute.xlu0 %1590
    %1592 = vrot.lane.b32.xlu0 %v1270, 88
    %v1593 = vpop.permute.xlu0 %1592
    %v1597 = vsel %vm209, %v1587, 0
    %v1600 = vsel %vm209, %v1589, 0
    %1602 = vmatprep.subr.mxu0 0.0
    %1603 = vmatpush1.msra.mxu0 %v1591
    %1604 = vmatprep.subr.mxu0 0.0
    %1605 = vmatpush1.msra.mxu0 %v1593
    %1606 = vmatprep.subr.mxu0 0.0
    %1607 = vmatpush1.msra.mxu0 0.0
    %1608 = vmatprep.subr.mxu0 0.0
    %1609 = vmatpush1.msra.mxu0 0.0
    %1610 = vmatprep.subr.mxu0 0.0
    %1611 = vmatpush1.msra.mxu0 0.0
    %1612 = vmatprep.subr.mxu0 0.0
    %1613 = vmatpush1.msra.mxu0 0.0
    %1614 = vmatprep.subr.mxu0 0.0
    %1615 = vmatpush1.msra.mxu0 0.0
    %1616 = vmatprep.subr.mxu0 0.0
    %1617 = vmatpush1.msra.mxu0 0.0
    %1618 = vmatprep.subr.mxu0 0.0
    %1619 = vmatpush1.msra.mxu0 0.0
    %1620 = vmatprep.subr.mxu0 0.0
    %1621 = vmatpush1.msra.mxu0 0.0
    %1622 = vmatprep.subr.mxu0 0.0
    %1623 = vmatpush1.msra.mxu0 0.0
    %1624 = vmatprep.subr.mxu0 0.0
    %1625 = vmatpush1.msra.mxu0 0.0
    %1626 = vmatprep.subr.mxu0 0.0
    %1627 = vmatpush1.msra.mxu0 0.0
    %1628 = vmatprep.subr.mxu0 0.0
    %1629 = vmatpush1.msra.mxu0 0.0
    %1630 = vmatprep.subr.mxu0 0.0
    %1631 = vmatpush1.msra.mxu0 0.0
    %1632 = vmatprep.subr.mxu0 0.0
    %1633 = vmatpush1.msra.mxu0 0.0
    %1634 = vmatprep.subr.mxu0 0.0
    %1635 = vmatpush1.msra.mxu0 0.0
    %1636 = vmatprep.subr.mxu0 0.0
    %1637 = vmatpush1.msra.mxu0 0.0
    %1638 = vmatprep.subr.mxu0 0.0
    %1639 = vmatpush1.msra.mxu0 0.0
    %1640 = vmatprep.subr.mxu0 0.0
    %1641 = vmatpush1.msra.mxu0 0.0
    %1642 = vmatprep.subr.mxu0 0.0
    %1643 = vmatpush1.msra.mxu0 0.0
    %1644 = vmatprep.subr.mxu0 0.0
    %1645 = vmatpush1.msra.mxu0 0.0
    %1646 = vmatprep.subr.mxu0 0.0
    %1647 = vmatpush1.msra.mxu0 0.0
    %1648 = vmatprep.subr.mxu0 0.0
    %1649 = vmatpush1.msra.mxu0 0.0
    %1650 = vmatprep.subr.mxu0 0.0
    %1651 = vmatpush1.msra.mxu0 0.0
    %1652 = vmatprep.subr.mxu0 0.0
    %1653 = vmatpush1.msra.mxu0 0.0
    %1654 = vmatprep.subr.mxu0 0.0
    %1655 = vmatpush1.msra.mxu0 0.0
    %1656 = vmatprep.subr.mxu0 0.0
    %1657 = vmatpush1.msra.mxu0 0.0
    %1658 = vmatprep.subr.mxu0 0.0
    %1659 = vmatpush1.msra.mxu0 0.0
    %1660 = vmatprep.subr.mxu0 0.0
    %1661 = vmatpush1.msra.mxu0 0.0
    %1662 = vmatprep.subr.mxu0 0.0
    %1663 = vmatpush1.msra.mxu0 0.0
    %1664 = vmatprep.subr.mxu0 0.0
    %1665 = vmatpush1.msra.mxu0 0.0
    %1666 = vmatprep.mubr.f32.mxu0 0.0
    %1667 = vmatmul.mubr.f32.gmra.mrb[0].mxu0 %v1597
    %v1668 = vpop.f32.mrb[0].mxu0
    %v1669 = vadd.f32 0.0, %v1668
    %v1670 = vpop.f32.mrb[0].mxu0
    %1671 = vmatprep.mubr.f32.mxu0 0.0
    %1672 = vmatmul.mubr.f32.gmra.mrb[0].mxu0 %v1600
    %v1673 = vpop.f32.mrb[0].mxu0
    %v1674 = vadd.f32 0.0, %v1673
    %v1675 = vpop.f32.mrb[0].mxu0
    %1676 = vdwg.mxu0
    %1677 = vrot.lane.b32.xlu0 %v1173, 112
    %v1678 = vpop.permute.xlu0 %1677
    %1679 = vrot.lane.b32.xlu0 %v1178, 112
    %v1680 = vpop.permute.xlu0 %1679
    %1681 = vrot.lane.b32.xlu0 %v1265, 112
    %v1682 = vpop.permute.xlu0 %1681
    %1683 = vrot.lane.b32.xlu0 %v1270, 112
    %v1684 = vpop.permute.xlu0 %1683
    %v1685 = vsel %vm125, %v1678, 0
    %v1687 = vsel %vm125, %v1680, 0
    %v1689 = vsel %vm125, %v1682, 0
    %v1691 = vsel %vm125, %v1684, 0
    %1693 = vmatprep.subr.mxu0 0.0
    %1694 = vmatpush1.xpose.msra.mxu0 %v1689
    %1695 = vmatprep.subr.mxu0 0.0
    %1696 = vmatpush1.xpose.msra.mxu0 %v1691
    %1697 = vmatprep.subr.mxu0 0.0
    %1698 = vmatpush1.xpose.msra.mxu0 0.0
    %1699 = vmatprep.subr.mxu0 0.0
    %1700 = vmatpush1.xpose.msra.mxu0 0.0
    %1701 = vmatprep.subr.mxu0 0.0
    %1702 = vmatpush1.xpose.msra.mxu0 0.0
    %1703 = vmatprep.subr.mxu0 0.0
    %1704 = vmatpush1.xpose.msra.mxu0 0.0
    %1705 = vmatprep.subr.mxu0 0.0
    %1706 = vmatpush1.xpose.msra.mxu0 0.0
    %1707 = vmatprep.subr.mxu0 0.0
    %1708 = vmatpush1.xpose.msra.mxu0 0.0
    %1709 = vmatprep.subr.mxu0 0.0
    %1710 = vmatpush1.xpose.msra.mxu0 0.0
    %1711 = vmatprep.subr.mxu0 0.0
    %1712 = vmatpush1.xpose.msra.mxu0 0.0
    %1713 = vmatprep.subr.mxu0 0.0
    %1714 = vmatpush1.xpose.msra.mxu0 0.0
    %1715 = vmatprep.subr.mxu0 0.0
    %1716 = vmatpush1.xpose.msra.mxu0 0.0
    %1717 = vmatprep.subr.mxu0 0.0
    %1718 = vmatpush1.xpose.msra.mxu0 0.0
    %1719 = vmatprep.subr.mxu0 0.0
    %1720 = vmatpush1.xpose.msra.mxu0 0.0
    %1721 = vmatprep.subr.mxu0 0.0
    %1722 = vmatpush1.xpose.msra.mxu0 0.0
    %1723 = vmatprep.subr.mxu0 0.0
    %1724 = vmatpush1.xpose.msra.mxu0 0.0
    %1725 = vmatprep.subr.mxu0 0.0
    %1726 = vmatpush1.xpose.msra.mxu0 0.0
    %1727 = vmatprep.subr.mxu0 0.0
    %1728 = vmatpush1.xpose.msra.mxu0 0.0
    %1729 = vmatprep.subr.mxu0 0.0
    %1730 = vmatpush1.xpose.msra.mxu0 0.0
    %1731 = vmatprep.subr.mxu0 0.0
    %1732 = vmatpush1.xpose.msra.mxu0 0.0
    %1733 = vmatprep.subr.mxu0 0.0
    %1734 = vmatpush1.xpose.msra.mxu0 0.0
    %1735 = vmatprep.subr.mxu0 0.0
    %1736 = vmatpush1.xpose.msra.mxu0 0.0
    %1737 = vmatprep.subr.mxu0 0.0
    %1738 = vmatpush1.xpose.msra.mxu0 0.0
    %1739 = vmatprep.subr.mxu0 0.0
    %1740 = vmatpush1.xpose.msra.mxu0 0.0
    %1741 = vmatprep.subr.mxu0 0.0
    %1742 = vmatpush1.xpose.msra.mxu0 0.0
    %1743 = vmatprep.subr.mxu0 0.0
    %1744 = vmatpush1.xpose.msra.mxu0 0.0
    %1745 = vmatprep.subr.mxu0 0.0
    %1746 = vmatpush1.xpose.msra.mxu0 0.0
    %1747 = vmatprep.subr.mxu0 0.0
    %1748 = vmatpush1.xpose.msra.mxu0 0.0
    %1749 = vmatprep.subr.mxu0 0.0
    %1750 = vmatpush1.xpose.msra.mxu0 0.0
    %1751 = vmatprep.subr.mxu0 0.0
    %1752 = vmatpush1.xpose.msra.mxu0 0.0
    %1753 = vmatprep.subr.mxu0 0.0
    %1754 = vmatpush1.xpose.msra.mxu0 0.0
    %1755 = vmatprep.subr.mxu0 0.0
    %1756 = vmatpush1.xpose.msra.mxu0 0.0
    %1757 = vmatprep.mubr.f32.mxu0 0.0
    %1758 = vmatmul.mubr.f32.gmra.mrb[0].mxu0 %v1685
    %v1759 = vpop.f32.mrb[0].mxu0
    %v1760 = vadd.f32 %v1276, %v1759
    %v1761 = vpop.f32.mrb[0].mxu0
    %1762 = vmatprep.mubr.f32.mxu0 0.0
    %1763 = vmatmul.mubr.f32.gmra.mrb[0].mxu0 %v1687
    %v1764 = vpop.f32.mrb[0].mxu0
    %v1765 = vadd.f32 %v1278, %v1764
    %v1766 = vpop.f32.mrb[0].mxu0
    %1767 = vdwg.mxu0
    %v1768 = vsel %vm209, %v1760, -inf
    %1769 = vmax.xlane.f32.xlu0 %v1768
    %v1770 = vpop.xlane.xlu0 %1769
    %v1771 = vsel %vm209, %v1765, -inf
    %1772 = vmax.xlane.f32.xlu0 %v1771
    %v1773 = vpop.xlane.xlu0 %1772
    %v1774 = vsub.f32 %v1760, %v1770
    %v1775 = vsub.f32 %v1765, %v1773
    %v1776 = vmul.f32 %v1774, 1.442695
    %v1777 = vpow.pop %v1776
    %v1778 = vmul.f32 %v1775, 1.442695
    %v1779 = vpow.pop %v1778
    %v1780 = vsel %vm209, %v1777, 0.0
    %1781 = vadd.xlane.f32.xlu0 %v1780
    %v1782 = vpop.xlane.xlu0 %1781
    %v1783 = vsel %vm209, %v1779, 0.0
    %1784 = vadd.xlane.f32.xlu0 %v1783
    %v1785 = vpop.xlane.xlu0 %1784
    %v1786 = vrcp.pop %v1782
    %v1787 = vmul.f32 %v1777, %v1786
    %v1788 = vrcp.pop %v1785
    %v1789 = vmul.f32 %v1779, %v1788
    %1790 = vrot.lane.b32.xlu0 %v1265, 80
    %v1791 = vpop.permute.xlu0 %1790
    %1792 = vrot.lane.b32.xlu0 %v1270, 80
    %v1793 = vpop.permute.xlu0 %1792
    %v1797 = vsel %vm209, %v1787, 0
    %v1800 = vsel %vm209, %v1789, 0
    %1802 = vmatprep.subr.mxu0 0.0
    %1803 = vmatpush1.msra.mxu0 %v1791
    %1804 = vmatprep.subr.mxu0 0.0
    %1805 = vmatpush1.msra.mxu0 %v1793
    %1806 = vmatprep.subr.mxu0 0.0
    %1807 = vmatpush1.msra.mxu0 0.0
    %1808 = vmatprep.subr.mxu0 0.0
    %1809 = vmatpush1.msra.mxu0 0.0
    %1810 = vmatprep.subr.mxu0 0.0
    %1811 = vmatpush1.msra.mxu0 0.0
    %1812 = vmatprep.subr.mxu0 0.0
    %1813 = vmatpush1.msra.mxu0 0.0
    %1814 = vmatprep.subr.mxu0 0.0
    %1815 = vmatpush1.msra.mxu0 0.0
    %1816 = vmatprep.subr.mxu0 0.0
    %1817 = vmatpush1.msra.mxu0 0.0
    %1818 = vmatprep.subr.mxu0 0.0
    %1819 = vmatpush1.msra.mxu0 0.0
    %1820 = vmatprep.subr.mxu0 0.0
    %1821 = vmatpush1.msra.mxu0 0.0
    %1822 = vmatprep.subr.mxu0 0.0
    %1823 = vmatpush1.msra.mxu0 0.0
    %1824 = vmatprep.subr.mxu0 0.0
    %1825 = vmatpush1.msra.mxu0 0.0
    %1826 = vmatprep.subr.mxu0 0.0
    %1827 = vmatpush1.msra.mxu0 0.0
    %1828 = vmatprep.subr.mxu0 0.0
    %1829 = vmatpush1.msra.mxu0 0.0
    %1830 = vmatprep.subr.mxu0 0.0
    %1831 = vmatpush1.msra.mxu0 0.0
    %1832 = vmatprep.subr.mxu0 0.0
    %1833 = vmatpush1.msra.mxu0 0.0
    %1834 = vmatprep.subr.mxu0 0.0
    %1835 = vmatpush1.msra.mxu0 0.0
    %1836 = vmatprep.subr.mxu0 0.0
    %1837 = vmatpush1.msra.mxu0 0.0
    %1838 = vmatprep.subr.mxu0 0.0
    %1839 = vmatpush1.msra.mxu0 0.0
    %1840 = vmatprep.subr.mxu0 0.0
    %1841 = vmatpush1.msra.mxu0 0.0
    %1842 = vmatprep.subr.mxu0 0.0
    %1843 = vmatpush1.msra.mxu0 0.0
    %1844 = vmatprep.subr.mxu0 0.0
    %1845 = vmatpush1.msra.mxu0 0.0
    %1846 = vmatprep.subr.mxu0 0.0
    %1847 = vmatpush1.msra.mxu0 0.0
    %1848 = vmatprep.subr.mxu0 0.0
    %1849 = vmatpush1.msra.mxu0 0.0
    %1850 = vmatprep.subr.mxu0 0.0
    %1851 = vmatpush1.msra.mxu0 0.0
    %1852 = vmatprep.subr.mxu0 0.0
    %1853 = vmatpush1.msra.mxu0 0.0
    %1854 = vmatprep.subr.mxu0 0.0
    %1855 = vmatpush1.msra.mxu0 0.0
    %1856 = vmatprep.subr.mxu0 0.0
    %1857 = vmatpush1.msra.mxu0 0.0
    %1858 = vmatprep.subr.mxu0 0.0
    %1859 = vmatpush1.msra.mxu0 0.0
    %1860 = vmatprep.subr.mxu0 0.0
    %1861 = vmatpush1.msra.mxu0 0.0
    %1862 = vmatprep.subr.mxu0 0.0
    %1863 = vmatpush1.msra.mxu0 0.0
    %1864 = vmatprep.subr.mxu0 0.0
    %1865 = vmatpush1.msra.mxu0 0.0
    %1866 = vmatprep.mubr.f32.mxu0 0.0
    %1867 = vmatmul.mubr.f32.gmra.mrb[0].mxu0 %v1797
    %v1868 = vpop.f32.mrb[0].mxu0
    %v1869 = vadd.f32 0.0, %v1868
    %v1870 = vpop.f32.mrb[0].mxu0
    %1871 = vmatprep.mubr.f32.mxu0 0.0
    %1872 = vmatmul.mubr.f32.gmra.mrb[0].mxu0 %v1800
    %v1873 = vpop.f32.mrb[0].mxu0
    %v1874 = vadd.f32 0.0, %v1873
    %v1875 = vpop.f32.mrb[0].mxu0
    %1876 = vdwg.mxu0
    %1877 = vrot.lane.b32.xlu0 %v1173, 104
    %v1878 = vpop.permute.xlu0 %1877
    %1879 = vrot.lane.b32.xlu0 %v1178, 104
    %v1880 = vpop.permute.xlu0 %1879
    %1881 = vrot.lane.b32.xlu0 %v1265, 104
    %v1882 = vpop.permute.xlu0 %1881
    %1883 = vrot.lane.b32.xlu0 %v1270, 104
    %v1884 = vpop.permute.xlu0 %1883
    %v1885 = vsel %vm125, %v1878, 0
    %v1887 = vsel %vm125, %v1880, 0
    %v1889 = vsel %vm125, %v1882, 0
    %v1891 = vsel %vm125, %v1884, 0
    %1893 = vmatprep.subr.mxu0 0.0
    %1894 = vmatpush1.xpose.msra.mxu0 %v1889
    %1895 = vmatprep.subr.mxu0 0.0
    %1896 = vmatpush1.xpose.msra.mxu0 %v1891
    %1897 = vmatprep.subr.mxu0 0.0
    %1898 = vmatpush1.xpose.msra.mxu0 0.0
    %1899 = vmatprep.subr.mxu0 0.0
    %1900 = vmatpush1.xpose.msra.mxu0 0.0
    %1901 = vmatprep.subr.mxu0 0.0
    %1902 = vmatpush1.xpose.msra.mxu0 0.0
    %1903 = vmatprep.subr.mxu0 0.0
    %1904 = vmatpush1.xpose.msra.mxu0 0.0
    %1905 = vmatprep.subr.mxu0 0.0
    %1906 = vmatpush1.xpose.msra.mxu0 0.0
    %1907 = vmatprep.subr.mxu0 0.0
    %1908 = vmatpush1.xpose.msra.mxu0 0.0
    %1909 = vmatprep.subr.mxu0 0.0
    %1910 = vmatpush1.xpose.msra.mxu0 0.0
    %1911 = vmatprep.subr.mxu0 0.0
    %1912 = vmatpush1.xpose.msra.mxu0 0.0
    %1913 = vmatprep.subr.mxu0 0.0
    %1914 = vmatpush1.xpose.msra.mxu0 0.0
    %1915 = vmatprep.subr.mxu0 0.0
    %1916 = vmatpush1.xpose.msra.mxu0 0.0
    %1917 = vmatprep.subr.mxu0 0.0
    %1918 = vmatpush1.xpose.msra.mxu0 0.0
    %1919 = vmatprep.subr.mxu0 0.0
    %1920 = vmatpush1.xpose.msra.mxu0 0.0
    %1921 = vmatprep.subr.mxu0 0.0
    %1922 = vmatpush1.xpose.msra.mxu0 0.0
    %1923 = vmatprep.subr.mxu0 0.0
    %1924 = vmatpush1.xpose.msra.mxu0 0.0
    %1925 = vmatprep.subr.mxu0 0.0
    %1926 = vmatpush1.xpose.msra.mxu0 0.0
    %1927 = vmatprep.subr.mxu0 0.0
    %1928 = vmatpush1.xpose.msra.mxu0 0.0
    %1929 = vmatprep.subr.mxu0 0.0
    %1930 = vmatpush1.xpose.msra.mxu0 0.0
    %1931 = vmatprep.subr.mxu0 0.0
    %1932 = vmatpush1.xpose.msra.mxu0 0.0
    %1933 = vmatprep.subr.mxu0 0.0
    %1934 = vmatpush1.xpose.msra.mxu0 0.0
    %1935 = vmatprep.subr.mxu0 0.0
    %1936 = vmatpush1.xpose.msra.mxu0 0.0
    %1937 = vmatprep.subr.mxu0 0.0
    %1938 = vmatpush1.xpose.msra.mxu0 0.0
    %1939 = vmatprep.subr.mxu0 0.0
    %1940 = vmatpush1.xpose.msra.mxu0 0.0
    %1941 = vmatprep.subr.mxu0 0.0
    %1942 = vmatpush1.xpose.msra.mxu0 0.0
    %1943 = vmatprep.subr.mxu0 0.0
    %1944 = vmatpush1.xpose.msra.mxu0 0.0
    %1945 = vmatprep.subr.mxu0 0.0
    %1946 = vmatpush1.xpose.msra.mxu0 0.0
    %1947 = vmatprep.subr.mxu0 0.0
    %1948 = vmatpush1.xpose.msra.mxu0 0.0
    %1949 = vmatprep.subr.mxu0 0.0
    %1950 = vmatpush1.xpose.msra.mxu0 0.0
    %1951 = vmatprep.subr.mxu0 0.0
    %1952 = vmatpush1.xpose.msra.mxu0 0.0
    %1953 = vmatprep.subr.mxu0 0.0
    %1954 = vmatpush1.xpose.msra.mxu0 0.0
    %1955 = vmatprep.subr.mxu0 0.0
    %1956 = vmatpush1.xpose.msra.mxu0 0.0
    %1957 = vmatprep.mubr.f32.mxu0 0.0
    %1958 = vmatmul.mubr.f32.gmra.mrb[0].mxu0 %v1885
    %v1959 = vpop.f32.mrb[0].mxu0
    %v1960 = vadd.f32 %v1276, %v1959
    %v1961 = vpop.f32.mrb[0].mxu0
    %1962 = vmatprep.mubr.f32.mxu0 0.0
    %1963 = vmatmul.mubr.f32.gmra.mrb[0].mxu0 %v1887
    %v1964 = vpop.f32.mrb[0].mxu0
    %v1965 = vadd.f32 %v1278, %v1964
    %v1966 = vpop.f32.mrb[0].mxu0
    %1967 = vdwg.mxu0
    %v1968 = vsel %vm209, %v1960, -inf
    %1969 = vmax.xlane.f32.xlu0 %v1968
    %v1970 = vpop.xlane.xlu0 %1969
    %v1971 = vsel %vm209, %v1965, -inf
    %1972 = vmax.xlane.f32.xlu0 %v1971
    %v1973 = vpop.xlane.xlu0 %1972
    %v1974 = vsub.f32 %v1960, %v1970
    %v1975 = vsub.f32 %v1965, %v1973
    %v1976 = vmul.f32 %v1974, 1.442695
    %v1977 = vpow.pop %v1976
    %v1978 = vmul.f32 %v1975, 1.442695
    %v1979 = vpow.pop %v1978
    %v1980 = vsel %vm209, %v1977, 0.0
    %1981 = vadd.xlane.f32.xlu0 %v1980
    %v1982 = vpop.xlane.xlu0 %1981
    %v1983 = vsel %vm209, %v1979, 0.0
    %1984 = vadd.xlane.f32.xlu0 %v1983
    %v1985 = vpop.xlane.xlu0 %1984
    %v1986 = vrcp.pop %v1982
    %v1987 = vmul.f32 %v1977, %v1986
    %v1988 = vrcp.pop %v1985
    %v1989 = vmul.f32 %v1979, %v1988
    %1990 = vrot.lane.b32.xlu0 %v1265, 72
    %v1991 = vpop.permute.xlu0 %1990
    %1992 = vrot.lane.b32.xlu0 %v1270, 72
    %v1993 = vpop.permute.xlu0 %1992
    %v1997 = vsel %vm209, %v1987, 0
    %v2000 = vsel %vm209, %v1989, 0
    %2002 = vmatprep.subr.mxu0 0.0
    %2003 = vmatpush1.msra.mxu0 %v1991
    %2004 = vmatprep.subr.mxu0 0.0
    %2005 = vmatpush1.msra.mxu0 %v1993
    %2006 = vmatprep.subr.mxu0 0.0
    %2007 = vmatpush1.msra.mxu0 0.0
    %2008 = vmatprep.subr.mxu0 0.0
    %2009 = vmatpush1.msra.mxu0 0.0
    %2010 = vmatprep.subr.mxu0 0.0
    %2011 = vmatpush1.msra.mxu0 0.0
    %2012 = vmatprep.subr.mxu0 0.0
    %2013 = vmatpush1.msra.mxu0 0.0
    %2014 = vmatprep.subr.mxu0 0.0
    %2015 = vmatpush1.msra.mxu0 0.0
    %2016 = vmatprep.subr.mxu0 0.0
    %2017 = vmatpush1.msra.mxu0 0.0
    %2018 = vmatprep.subr.mxu0 0.0
    %2019 = vmatpush1.msra.mxu0 0.0
    %2020 = vmatprep.subr.mxu0 0.0
    %2021 = vmatpush1.msra.mxu0 0.0
    %2022 = vmatprep.subr.mxu0 0.0
    %2023 = vmatpush1.msra.mxu0 0.0
    %2024 = vmatprep.subr.mxu0 0.0
    %2025 = vmatpush1.msra.mxu0 0.0
    %2026 = vmatprep.subr.mxu0 0.0
    %2027 = vmatpush1.msra.mxu0 0.0
    %2028 = vmatprep.subr.mxu0 0.0
    %2029 = vmatpush1.msra.mxu0 0.0
    %2030 = vmatprep.subr.mxu0 0.0
    %2031 = vmatpush1.msra.mxu0 0.0
    %2032 = vmatprep.subr.mxu0 0.0
    %2033 = vmatpush1.msra.mxu0 0.0
    %2034 = vmatprep.subr.mxu0 0.0
    %2035 = vmatpush1.msra.mxu0 0.0
    %2036 = vmatprep.subr.mxu0 0.0
    %2037 = vmatpush1.msra.mxu0 0.0
    %2038 = vmatprep.subr.mxu0 0.0
    %2039 = vmatpush1.msra.mxu0 0.0
    %2040 = vmatprep.subr.mxu0 0.0
    %2041 = vmatpush1.msra.mxu0 0.0
    %2042 = vmatprep.subr.mxu0 0.0
    %2043 = vmatpush1.msra.mxu0 0.0
    %2044 = vmatprep.subr.mxu0 0.0
    %2045 = vmatpush1.msra.mxu0 0.0
    %2046 = vmatprep.subr.mxu0 0.0
    %2047 = vmatpush1.msra.mxu0 0.0
    %2048 = vmatprep.subr.mxu0 0.0
    %2049 = vmatpush1.msra.mxu0 0.0
    %2050 = vmatprep.subr.mxu0 0.0
    %2051 = vmatpush1.msra.mxu0 0.0
    %2052 = vmatprep.subr.mxu0 0.0
    %2053 = vmatpush1.msra.mxu0 0.0
    %2054 = vmatprep.subr.mxu0 0.0
    %2055 = vmatpush1.msra.mxu0 0.0
    %2056 = vmatprep.subr.mxu0 0.0
    %2057 = vmatpush1.msra.mxu0 0.0
    %2058 = vmatprep.subr.mxu0 0.0
    %2059 = vmatpush1.msra.mxu0 0.0
    %2060 = vmatprep.subr.mxu0 0.0
    %2061 = vmatpush1.msra.mxu0 0.0
    %2062 = vmatprep.subr.mxu0 0.0
    %2063 = vmatpush1.msra.mxu0 0.0
    %2064 = vmatprep.subr.mxu0 0.0
    %2065 = vmatpush1.msra.mxu0 0.0
    %2066 = vmatprep.mubr.f32.mxu0 0.0
    %2067 = vmatmul.mubr.f32.gmra.mrb[0].mxu0 %v1997
    %v2068 = vpop.f32.mrb[0].mxu0
    %v2069 = vadd.f32 0.0, %v2068
    %v2070 = vpop.f32.mrb[0].mxu0
    %2071 = vmatprep.mubr.f32.mxu0 0.0
    %2072 = vmatmul.mubr.f32.gmra.mrb[0].mxu0 %v2000
    %v2073 = vpop.f32.mrb[0].mxu0
    %v2074 = vadd.f32 0.0, %v2073
    %v2075 = vpop.f32.mrb[0].mxu0
    %2076 = vdwg.mxu0
    %2079 = vrot.lane.b32.xlu0 %v1669, 8
    %v2080 = vpop.permute.xlu0 %2079
    %2081 = vrot.lane.b32.xlu0 %v1674, 8
    %v2082 = vpop.permute.xlu0 %2081
    %2087 = vrot.lane.b32.xlu0 %v1869, 16
    %v2088 = vpop.permute.xlu0 %2087
    %2089 = vrot.lane.b32.xlu0 %v1874, 16
    %v2090 = vpop.permute.xlu0 %2089
    %2095 = vrot.lane.b32.xlu0 %v2069, 24
    %v2096 = vpop.permute.xlu0 %2095
    %2097 = vrot.lane.b32.xlu0 %v2074, 24
    %v2098 = vpop.permute.xlu0 %2097
    %v2101 = vsel %vm125, %v1469, %v2080
    %v2102 = vsel %vm125, %v1474, %v2082
    %v2103 = vsel %vm209, %v2101, %v2088
    %v2104 = vsel %vm209, %v2102, %v2090
    %v2105 = vsel %vm947, %v2103, %v2096
    %v2106 = vsel %vm947, %v2104, %v2098
    %v2107 = vlaneseq
    %v2108 = vshrl.u32 %v2107, 7
    %v2109 = vsub.s32 3, %v2108
    %v2110 = vrot.slane %v31, %v2109
    %2115 = vrot.lane.b32.xlu0 %v1093, 96
    %v2116 = vpop.permute.xlu0 %2115
    %2117 = vrot.lane.b32.xlu0 %v1095, 96
    %v2118 = vpop.permute.xlu0 %2117
    %2119 = vrot.lane.b32.xlu0 %v1097, 96
    %v2120 = vpop.permute.xlu0 %2119
    %2121 = vrot.lane.b32.xlu0 %v1099, 96
    %v2122 = vpop.permute.xlu0 %2121
    %v2128 = vsel %vm37, %v2105, 0
    %v2131 = vsel %vm37, %v2106, 0
    %2133 = vmatprep.subr.mxu0 0.0
    %2134 = vmatpush1.msra.mxu0 %v2116
    %2135 = vmatprep.subr.mxu0 0.0
    %2136 = vmatpush1.msra.mxu0 %v2118
    %2137 = vmatprep.subr.mxu0 0.0
    %2138 = vmatpush1.msra.mxu0 %v2120
    %2139 = vmatprep.subr.mxu0 0.0
    %2140 = vmatpush1.msra.mxu0 %v2122
    %2141 = vmatprep.subr.mxu0 0.0
    %2142 = vmatpush1.msra.mxu0 0.0
    %2143 = vmatprep.subr.mxu0 0.0
    %2144 = vmatpush1.msra.mxu0 0.0
    %2145 = vmatprep.subr.mxu0 0.0
    %2146 = vmatpush1.msra.mxu0 0.0
    %2147 = vmatprep.subr.mxu0 0.0
    %2148 = vmatpush1.msra.mxu0 0.0
    %2149 = vmatprep.subr.mxu0 0.0
    %2150 = vmatpush1.msra.mxu0 0.0
    %2151 = vmatprep.subr.mxu0 0.0
    %2152 = vmatpush1.msra.mxu0 0.0
    %2153 = vmatprep.subr.mxu0 0.0
    %2154 = vmatpush1.msra.mxu0 0.0
    %2155 = vmatprep.subr.mxu0 0.0
    %2156 = vmatpush1.msra.mxu0 0.0
    %2157 = vmatprep.subr.mxu0 0.0
    %2158 = vmatpush1.msra.mxu0 0.0
    %2159 = vmatprep.subr.mxu0 0.0
    %2160 = vmatpush1.msra.mxu0 0.0
    %2161 = vmatprep.subr.mxu0 0.0
    %2162 = vmatpush1.msra.mxu0 0.0
    %2163 = vmatprep.subr.mxu0 0.0
    %2164 = vmatpush1.msra.mxu0 0.0
    %2165 = vmatprep.subr.mxu0 0.0
    %2166 = vmatpush1.msra.mxu0 0.0
    %2167 = vmatprep.subr.mxu0 0.0
    %2168 = vmatpush1.msra.mxu0 0.0
    %2169 = vmatprep.subr.mxu0 0.0
    %2170 = vmatpush1.msra.mxu0 0.0
    %2171 = vmatprep.subr.mxu0 0.0
    %2172 = vmatpush1.msra.mxu0 0.0
    %2173 = vmatprep.subr.mxu0 0.0
    %2174 = vmatpush1.msra.mxu0 0.0
    %2175 = vmatprep.subr.mxu0 0.0
    %2176 = vmatpush1.msra.mxu0 0.0
    %2177 = vmatprep.subr.mxu0 0.0
    %2178 = vmatpush1.msra.mxu0 0.0
    %2179 = vmatprep.subr.mxu0 0.0
    %2180 = vmatpush1.msra.mxu0 0.0
    %2181 = vmatprep.subr.mxu0 0.0
    %2182 = vmatpush1.msra.mxu0 0.0
    %2183 = vmatprep.subr.mxu0 0.0
    %2184 = vmatpush1.msra.mxu0 0.0
    %2185 = vmatprep.subr.mxu0 0.0
    %2186 = vmatpush1.msra.mxu0 0.0
    %2187 = vmatprep.subr.mxu0 0.0
    %2188 = vmatpush1.msra.mxu0 0.0
    %2189 = vmatprep.subr.mxu0 0.0
    %2190 = vmatpush1.msra.mxu0 0.0
    %2191 = vmatprep.subr.mxu0 0.0
    %2192 = vmatpush1.msra.mxu0 0.0
    %2193 = vmatprep.subr.mxu0 0.0
    %2194 = vmatpush1.msra.mxu0 0.0
    %2195 = vmatprep.subr.mxu0 0.0
    %2196 = vmatpush1.msra.mxu0 0.0
    %2197 = vmatprep.mubr.f32.mxu0 0.0
    %2198 = vmatmul.mubr.f32.gmra.mrb[0].mxu0 %v2128
    %v2199 = vpop.f32.mrb[0].mxu0
    %v2200 = vadd.f32 %v2110, %v2199
    %v2201 = vpop.f32.mrb[0].mxu0
    %2202 = vmatprep.mubr.f32.mxu0 0.0
    %2203 = vmatmul.mubr.f32.gmra.mrb[0].mxu0 %v2131
    %v2204 = vpop.f32.mrb[0].mxu0
    %v2205 = vadd.f32 %v2110, %v2204
    %v2206 = vpop.f32.mrb[0].mxu0
    %2207 = vdwg.mxu0
    %v2208 = vadd.f32 %v2200, %v1090
    %v2209 = vadd.f32 %v2205, %v1091
    %v2210 = vsel %vm37, %v2208, 0.0
    %2211 = vadd.xlane.f32.xlu0 %v2210
    %v2212 = vpop.xlane.xlu0 %2211
    %v2213 = vsel %vm37, %v2209, 0.0
    %2214 = vadd.xlane.f32.xlu0 %v2213
    %v2215 = vpop.xlane.xlu0 %2214
    %v2216 = vmul.f32 %v2212, %v1059
    %v2217 = vmul.f32 %v2215, %v1059
    %v2218 = vsub.f32 %v2208, %v2216
    %v2219 = vsub.f32 %v2209, %v2217
    %v2220 = vmul.f32 %v2218, %v2218
    %v2221 = vmul.f32 %v2219, %v2219
    %v2222 = vsel %vm37, %v2220, 0.0
    %2223 = vadd.xlane.f32.xlu0 %v2222
    %v2224 = vpop.xlane.xlu0 %2223
    %v2225 = vsel %vm37, %v2221, 0.0
    %2226 = vadd.xlane.f32.xlu0 %v2225
    %v2227 = vpop.xlane.xlu0 %2226
    %v2228 = vmul.f32 %v2224, %v1059
    %v2229 = vmul.f32 %v2227, %v1059
    %v2230 = vadd.f32 %v2228, 1e-05
    %v2231 = vadd.f32 %v2229, 1e-05
    %v2232 = vrsqrt.pop %v2230
    %v2233 = vrsqrt.pop %v2231
    %v2234 = vmul.f32 %v2218, %v2232
    %v2235 = vmul.f32 %v2219, %v2233
    %v2236 = vlaneseq
    %v2237 = vshrl.u32 %v2236, 7
    %v2238 = vsub.s32 4, %v2237
    %v2239 = vrot.slane %v31, %v2238
    %v2240 = vmul.f32 %v2234, %v2239
    %v2241 = vmul.f32 %v2235, %v2239
    %v2242 = vlaneseq
    %v2243 = vshrl.u32 %v2242, 7
    %v2244 = vsub.s32 5, %v2243
    %v2245 = vrot.slane %v31, %v2244
    %v2246 = vadd.f32 %v2240, %v2245
    %v2247 = vadd.f32 %v2241, %v2245
    %v2248 = vlaneseq
    %v2249 = vshrl.u32 %v2248, 7
    %v2250 = vsub.s32 1, %v2249
    %v2251 = vrot.slane %v32, %v2250
    %v2253 = vsel %vm37, %v2246, 0
    %v2256 = vsel %vm37, %v2247, 0
    %2258 = vmatprep.subr.mxu0 0.0
    %2259 = vmatpush1.msra.mxu0 %v1092
    %2260 = vmatprep.subr.mxu0 0.0
    %2261 = vmatpush1.msra.mxu0 %v1094
    %2262 = vmatprep.subr.mxu0 0.0
    %2263 = vmatpush1.msra.mxu0 %v1096
    %2264 = vmatprep.subr.mxu0 0.0
    %2265 = vmatpush1.msra.mxu0 %v1098
    %2266 = vmatprep.subr.mxu0 0.0
    %2267 = vmatpush1.msra.mxu0 0.0
    %2268 = vmatprep.subr.mxu0 0.0
    %2269 = vmatpush1.msra.mxu0 0.0
    %2270 = vmatprep.subr.mxu0 0.0
    %2271 = vmatpush1.msra.mxu0 0.0
    %2272 = vmatprep.subr.mxu0 0.0
    %2273 = vmatpush1.msra.mxu0 0.0
    %2274 = vmatprep.subr.mxu0 0.0
    %2275 = vmatpush1.msra.mxu0 0.0
    %2276 = vmatprep.subr.mxu0 0.0
    %2277 = vmatpush1.msra.mxu0 0.0
    %2278 = vmatprep.subr.mxu0 0.0
    %2279 = vmatpush1.msra.mxu0 0.0
    %2280 = vmatprep.subr.mxu0 0.0
    %2281 = vmatpush1.msra.mxu0 0.0
    %2282 = vmatprep.subr.mxu0 0.0
    %2283 = vmatpush1.msra.mxu0 0.0
    %2284 = vmatprep.subr.mxu0 0.0
    %2285 = vmatpush1.msra.mxu0 0.0
    %2286 = vmatprep.subr.mxu0 0.0
    %2287 = vmatpush1.msra.mxu0 0.0
    %2288 = vmatprep.subr.mxu0 0.0
    %2289 = vmatpush1.msra.mxu0 0.0
    %2290 = vmatprep.subr.mxu0 0.0
    %2291 = vmatpush1.msra.mxu0 0.0
    %2292 = vmatprep.subr.mxu0 0.0
    %2293 = vmatpush1.msra.mxu0 0.0
    %2294 = vmatprep.subr.mxu0 0.0
    %2295 = vmatpush1.msra.mxu0 0.0
    %2296 = vmatprep.subr.mxu0 0.0
    %2297 = vmatpush1.msra.mxu0 0.0
    %2298 = vmatprep.subr.mxu0 0.0
    %2299 = vmatpush1.msra.mxu0 0.0
    %2300 = vmatprep.subr.mxu0 0.0
    %2301 = vmatpush1.msra.mxu0 0.0
    %2302 = vmatprep.subr.mxu0 0.0
    %2303 = vmatpush1.msra.mxu0 0.0
    %2304 = vmatprep.subr.mxu0 0.0
    %2305 = vmatpush1.msra.mxu0 0.0
    %2306 = vmatprep.subr.mxu0 0.0
    %2307 = vmatpush1.msra.mxu0 0.0
    %2308 = vmatprep.subr.mxu0 0.0
    %2309 = vmatpush1.msra.mxu0 0.0
    %2310 = vmatprep.subr.mxu0 0.0
    %2311 = vmatpush1.msra.mxu0 0.0
    %2312 = vmatprep.subr.mxu0 0.0
    %2313 = vmatpush1.msra.mxu0 0.0
    %2314 = vmatprep.subr.mxu0 0.0
    %2315 = vmatpush1.msra.mxu0 0.0
    %2316 = vmatprep.subr.mxu0 0.0
    %2317 = vmatpush1.msra.mxu0 0.0
    %2318 = vmatprep.subr.mxu0 0.0
    %2319 = vmatpush1.msra.mxu0 0.0
    %2320 = vmatprep.subr.mxu0 0.0
    %2321 = vmatpush1.msra.mxu0 0.0
    %2322 = vmatprep.mubr.f32.mxu0 0.0
    %2323 = vmatmul.mubr.f32.gmra.mrb[0].mxu0 %v2253
    %v2324 = vpop.f32.mrb[0].mxu0
    %v2325 = vadd.f32 %v2251, %v2324
    %v2326 = vpop.f32.mrb[0].mxu0
    %2327 = vmatprep.mubr.f32.mxu0 0.0
    %2328 = vmatmul.mubr.f32.gmra.mrb[0].mxu0 %v2256
    %v2329 = vpop.f32.mrb[0].mxu0
    %v2330 = vadd.f32 %v2251, %v2329
    %v2331 = vpop.f32.mrb[0].mxu0
    %2332 = vdwg.mxu0
    %v2333 = vmax.f32 %v2325, 0.0
    %v2334 = vmax.f32 %v2330, 0.0
    %v2335 = vld [vmem:[%s5] sm:$0xff]
    %v2336 = vld [vmem:[%s5 + $0x8] sm:$0xff]
    %v2337 = vld [vmem:[%s5 + $0x10] sm:$0xff]
    %v2338 = vld [vmem:[%s5 + $0x18] sm:$0xff]
    %v2339 = vld [vmem:[%s5 + $0x20] sm:$0xff]
    %v2340 = vld [vmem:[%s5 + $0x28] sm:$0xff]
    %v2341 = vld [vmem:[%s5 + $0x30] sm:$0xff]
    %v2342 = vld [vmem:[%s5 + $0x38] sm:$0xff]
    %v2343 = vld [vmem:[%s5 + $0x40] sm:$0xff]
    %v2344 = vld [vmem:[%s5 + $0x48] sm:$0xff]
    %v2345 = vld [vmem:[%s5 + $0x50] sm:$0xff]
    %v2346 = vld [vmem:[%s5 + $0x58] sm:$0xff]
    %v2347 = vld [vmem:[%s5 + $0x60] sm:$0xff]
    %v2348 = vld [vmem:[%s5 + $0x68] sm:$0xff]
    %v2349 = vld [vmem:[%s5 + $0x70] sm:$0xff]
    %v2350 = vld [vmem:[%s5 + $0x78] sm:$0xff]
    %v2351 = vlaneseq
    %v2352 = vshrl.u32 %v2351, 7
    %v2353 = vsub.s32 0, %v2352
    %v2354 = vrot.slane %v32, %v2353
    %2355 = vmatprep.subr.mxu0 0.0
    %2356 = vmatpush1.msra.mxu0 %v2335
    %2357 = vmatprep.subr.mxu0 0.0
    %2358 = vmatpush1.msra.mxu0 %v2336
    %2359 = vmatprep.subr.mxu0 0.0
    %2360 = vmatpush1.msra.mxu0 %v2337
    %2361 = vmatprep.subr.mxu0 0.0
    %2362 = vmatpush1.msra.mxu0 %v2338
    %2363 = vmatprep.subr.mxu0 0.0
    %2364 = vmatpush1.msra.mxu0 %v2339
    %2365 = vmatprep.subr.mxu0 0.0
    %2366 = vmatpush1.msra.mxu0 %v2340
    %2367 = vmatprep.subr.mxu0 0.0
    %2368 = vmatpush1.msra.mxu0 %v2341
    %2369 = vmatprep.subr.mxu0 0.0
    %2370 = vmatpush1.msra.mxu0 %v2342
    %2371 = vmatprep.subr.mxu0 0.0
    %2372 = vmatpush1.msra.mxu0 %v2343
    %2373 = vmatprep.subr.mxu0 0.0
    %2374 = vmatpush1.msra.mxu0 %v2344
    %2375 = vmatprep.subr.mxu0 0.0
    %2376 = vmatpush1.msra.mxu0 %v2345
    %2377 = vmatprep.subr.mxu0 0.0
    %2378 = vmatpush1.msra.mxu0 %v2346
    %2379 = vmatprep.subr.mxu0 0.0
    %2380 = vmatpush1.msra.mxu0 %v2347
    %2381 = vmatprep.subr.mxu0 0.0
    %2382 = vmatpush1.msra.mxu0 %v2348
    %2383 = vmatprep.subr.mxu0 0.0
    %2384 = vmatpush1.msra.mxu0 %v2349
    %2385 = vmatprep.subr.mxu0 0.0
    %2386 = vmatpush1.msra.mxu0 %v2350
    %2387 = vmatprep.subr.mxu0 0.0
    %2388 = vmatpush1.msra.mxu0 0.0
    %2389 = vmatprep.subr.mxu0 0.0
    %2390 = vmatpush1.msra.mxu0 0.0
    %2391 = vmatprep.subr.mxu0 0.0
    %2392 = vmatpush1.msra.mxu0 0.0
    %2393 = vmatprep.subr.mxu0 0.0
    %2394 = vmatpush1.msra.mxu0 0.0
    %2395 = vmatprep.subr.mxu0 0.0
    %2396 = vmatpush1.msra.mxu0 0.0
    %2397 = vmatprep.subr.mxu0 0.0
    %2398 = vmatpush1.msra.mxu0 0.0
    %2399 = vmatprep.subr.mxu0 0.0
    %2400 = vmatpush1.msra.mxu0 0.0
    %2401 = vmatprep.subr.mxu0 0.0
    %2402 = vmatpush1.msra.mxu0 0.0
    %2403 = vmatprep.subr.mxu0 0.0
    %2404 = vmatpush1.msra.mxu0 0.0
    %2405 = vmatprep.subr.mxu0 0.0
    %2406 = vmatpush1.msra.mxu0 0.0
    %2407 = vmatprep.subr.mxu0 0.0
    %2408 = vmatpush1.msra.mxu0 0.0
    %2409 = vmatprep.subr.mxu0 0.0
    %2410 = vmatpush1.msra.mxu0 0.0
    %2411 = vmatprep.subr.mxu0 0.0
    %2412 = vmatpush1.msra.mxu0 0.0
    %2413 = vmatprep.subr.mxu0 0.0
    %2414 = vmatpush1.msra.mxu0 0.0
    %2415 = vmatprep.subr.mxu0 0.0
    %2416 = vmatpush1.msra.mxu0 0.0
    %2417 = vmatprep.subr.mxu0 0.0
    %2418 = vmatpush1.msra.mxu0 0.0
    %2419 = vmatprep.mubr.f32.mxu0 0.0
    %2420 = vmatmul.mubr.f32.gmra.mrb[0].mxu0 %v2333
    %v2421 = vpop.f32.mrb[0].mxu0
    %v2422 = vadd.f32 %v2354, %v2421
    %v2423 = vpop.f32.mrb[0].mxu0
    %2424 = vmatprep.mubr.f32.mxu0 0.0
    %2425 = vmatmul.mubr.f32.gmra.mrb[0].mxu0 %v2334
    %v2426 = vpop.f32.mrb[0].mxu0
    %v2427 = vadd.f32 %v2354, %v2426
    %v2428 = vpop.f32.mrb[0].mxu0
    %2429 = vdwg.mxu0
    %v2430 = vadd.f32 %v2422, %v2246
    %v2431 = vadd.f32 %v2427, %v2247
    %v2432 = vsel %vm37, %v2430, 0.0
    %2433 = vadd.xlane.f32.xlu0 %v2432
    %v2434 = vpop.xlane.xlu0 %2433
    %v2435 = vsel %vm37, %v2431, 0.0
    %2436 = vadd.xlane.f32.xlu0 %v2435
    %v2437 = vpop.xlane.xlu0 %2436
    %v2438 = vmul.f32 %v2434, %v1059
    %v2439 = vmul.f32 %v2437, %v1059
    %v2440 = vsub.f32 %v2430, %v2438
    %v2441 = vsub.f32 %v2431, %v2439
    %v2442 = vmul.f32 %v2440, %v2440
    %v2443 = vmul.f32 %v2441, %v2441
    %v2444 = vsel %vm37, %v2442, 0.0
    %2445 = vadd.xlane.f32.xlu0 %v2444
    %v2446 = vpop.xlane.xlu0 %2445
    %v2447 = vsel %vm37, %v2443, 0.0
    %2448 = vadd.xlane.f32.xlu0 %v2447
    %v2449 = vpop.xlane.xlu0 %2448
    %v2450 = vmul.f32 %v2446, %v1059
    %v2451 = vmul.f32 %v2449, %v1059
    %v2452 = vadd.f32 %v2450, 1e-05
    %v2453 = vadd.f32 %v2451, 1e-05
    %v2454 = vrsqrt.pop %v2452
    %v2455 = vrsqrt.pop %v2453
    %v2456 = vmul.f32 %v2440, %v2454
    %v2457 = vmul.f32 %v2441, %v2455
    %v2458 = vlaneseq
    %v2459 = vshrl.u32 %v2458, 7
    %v2460 = vsub.s32 6, %v2459
    %v2461 = vrot.slane %v31, %v2460
    %v2462 = vmul.f32 %v2456, %v2461
    %v2463 = vmul.f32 %v2457, %v2461
    %v2464 = vlaneseq
    %v2465 = vshrl.u32 %v2464, 7
    %v2466 = vsub.s32 7, %v2465
    %v2467 = vrot.slane %v31, %v2466
    %v2468 = vadd.f32 %v2462, %v2467
    %v2469 = vadd.f32 %v2463, %v2467
    %2470 = vst.msk [vmem:[#allocation2] sm:$0xff] %vm37, %v2468
    %2471 = vst.msk [vmem:[#allocation2 + $0x8] sm:$0xff] %vm37, %v2469
    // Predicated region
    $region30: #{decoder_block_pallas.1} parent=1 // pred_check
      _
    $region31: #{decoder_block_pallas.1} parent=1 // pred_check_branch
      %2473 = sbr.rel (0) target = $region33
    $region32: #{decoder_block_pallas.1} parent=1 // pred_region
      %s2475 = ssub.s32 256, 256
      %2476 = vsyncadd [#allocation3], %s2475
      %s2477 = sshll.u32 [#allocation2], 4
      %s2478 = int_to_ptr.vmem [resolvable:$true] %s2477
      %2483 = dma.vmem_to_hbm [thread:$0]  %s2478, 256, %s7, [#allocation3], 128, 128, 8
    $region33: #{decoder_block_pallas.1} parent=1 // pred_fallthru
      _
    // Predicated region
    $region34: #{decoder_block_pallas.1} parent=1 // pred_check
      _
    $region35: #{decoder_block_pallas.1} parent=1 // pred_check_branch
      %2485 = sbr.rel (0) target = $region37
    $region36: #{decoder_block_pallas.1} parent=1 // pred_region
      %2486 = dma.done [#allocation3], 256
    $region37: #{decoder_block_pallas.1} parent=1 // pred_fallthru
      _
    %2487 = vsyncpa [#allocation3], 1

</llo_original>
